<compile_context>
chip_gen: v5e
topology: v5e:2x2
jax: 0.10.0
libtpu: 0.0.40
codegen_flags: <defaults>
</compile_context>

<pallas_src>
import math

import jax
import jax.numpy as jnp
from jax.experimental import pallas as pl
from jax.experimental.pallas import tpu as pltpu

# ---------------- configuration (small synthetic shapes) ----------------
B, T, C = 2, 2, 3            # batch, frames, RGB
H_IN, W_IN = 40, 40          # original video resolution
SIZE = (32, 32)              # args.input_size (self.size)
FH, FW = SIZE[0] // 8, SIZE[1] // 8   # self.fsize (latent / feature grid)
HW = FH * FW
REP = 4                      # repeat_times
N = 8                        # number of query points
D = 128                      # channels of unet.up_blocks[2] output (synthetic)
PATCH = 8
PDIM = C * PATCH * PATCH     # 192 (one 8x8 RGB patch -> latent stats)
LATC = 4                     # latent channels
TEXT_LEN, TEXT_DIM = 77, 768
NUM_TRAIN_TIMESTEPS = 1000


# ---------------- schedulers / helper matrices (glue, plain JAX) --------
def alphas_cumprod():
    # DDIMScheduler "scaled_linear" schedule used by SD 1.x
    betas = jnp.linspace(0.00085 ** 0.5, 0.012 ** 0.5,
                         NUM_TRAIN_TIMESTEPS, dtype=jnp.float32) ** 2
    return jnp.cumprod(1.0 - betas)


def resize_matrix(s_in, s_out):
    # F.interpolate(mode='bilinear', align_corners=False) along ONE axis,
    # expressed as a dense (s_out, s_in) matrix (separable resize).
    scale = s_in / s_out
    o = jnp.arange(s_out, dtype=jnp.float32)
    src = jnp.maximum(scale * (o + 0.5) - 0.5, 0.0)
    i0 = jnp.clip(jnp.floor(src), 0, s_in - 1).astype(jnp.int32)
    i1 = jnp.minimum(i0 + 1, s_in - 1)
    w1 = src - i0.astype(jnp.float32)
    w0 = 1.0 - w1
    return (w0[:, None] * jax.nn.one_hot(i0, s_in, dtype=jnp.float32)
            + w1[:, None] * jax.nn.one_hot(i1, s_in, dtype=jnp.float32))


def build_sample_weights(queries, h_in, w_in, bv, tv):
    # F.grid_sample(mode='bilinear', padding_mode='border',
    #               align_corners=False) expressed as a (B*N, B*T*HW) weight
    # matrix (frame + batch selection folded in), so the sampling becomes a
    # single lane-dense matmul inside the fused kernel.
    bq, nq, _ = queries.shape
    qt = queries[..., 0]
    # queries[:, :, 1] = x / W_in * size[1]; then x_grid = x' / size[1] * 2 - 1
    xg = queries[..., 1] / w_in * 2.0 - 1.0
    yg = queries[..., 2] / h_in * 2.0 - 1.0
    fx = jnp.clip(((xg + 1.0) * FW - 1.0) * 0.5, 0.0, FW - 1.0)
    fy = jnp.clip(((yg + 1.0) * FH - 1.0) * 0.5, 0.0, FH - 1.0)
    ix0 = jnp.floor(fx).astype(jnp.int32)
    iy0 = jnp.floor(fy).astype(jnp.int32)
    wx1 = fx - ix0.astype(jnp.float32)
    wy1 = fy - iy0.astype(jnp.float32)
    wx0, wy0 = 1.0 - wx1, 1.0 - wy1
    ix1 = jnp.minimum(ix0 + 1, FW - 1)
    iy1 = jnp.minimum(iy0 + 1, FH - 1)
    ti = jnp.clip(qt.astype(jnp.int32), 0, tv - 1)        # .long() truncation
    bidx = jnp.arange(bq, dtype=jnp.int32)[:, None]
    base = (bidx * tv + ti) * HW
    ncls = bq * tv * HW

    def corner(iy, ix, w):
        return w[..., None] * jax.nn.one_hot(base + iy * FW + ix, ncls,
                                             dtype=jnp.float32)

    wq = (corner(iy0, ix0, wy0 * wx0) + corner(iy0, ix1, wy0 * wx1)
          + corner(iy1, ix0, wy1 * wx0) + corner(iy1, ix1, wy1 * wx1))
    return wq.reshape(bq * nq, ncls)


# ---------------- Pallas kernel 1: separable bilinear resize -------------
def _resize_kernel(x_ref, rwt_ref, rh_ref, o_ref):
    # video_flat / 255 -> bilinear resize (two small separable matmuls)
    # -> *2 - 1.  Replaces the old 6.5 MB dense Kronecker weight.
    btc, h_out, w_out = o_ref.shape
    h_in = rh_ref.shape[1]
    x = x_ref[...] * (1.0 / 255.0)                          # (BTC*H_in, W_in)
    y = jnp.dot(x, rwt_ref[...],
                preferred_element_type=jnp.float32)         # (BTC*H_in, W_out)
    rh = rh_ref[...]                                        # (H_out, H_in)
    # H-resize per image (static unroll; same MXU work as a batched dot,
    # total FLOPs are trivial).
    for i in range(btc):
        yi = y[i * h_in:(i + 1) * h_in, :]                  # (H_in, W_out)
        o_ref[i] = jnp.dot(rh, yi,
                           preferred_element_type=jnp.float32) * 2.0 - 1.0


def resize_call(x2d, rw_t, rh, btc):
    m, w_in = x2d.shape
    w_out = rw_t.shape[1]
    h_out = rh.shape[0]
    return pl.pallas_call(
        _resize_kernel,
        out_shape=jax.ShapeDtypeStruct((btc, h_out, w_out), jnp.float32),
        grid=(1,),
        in_specs=[pl.BlockSpec((m, w_in), lambda i: (0, 0)),
                  pl.BlockSpec((w_in, w_out), lambda i: (0, 0)),
                  pl.BlockSpec((h_out, w_in), lambda i: (0, 0))],
        out_specs=pl.BlockSpec((btc, h_out, w_out), lambda i: (0, 0, 0)),
        compiler_params=pltpu.CompilerParams(
            dimension_semantics=("arbitrary",)),
    )(x2d, rw_t, rh)


# ---------------- Pallas kernel 2: fused encode+noise+UNet+sample --------
def _fused_kernel(coef_ref, xp_ref, wmu_ref, bmu_ref, wlv_ref, blv_ref,
                  e1_ref, e2_ref, w1_ref, ctx_ref, w2_ref, wq_ref,
                  f_out_ref, q_out_ref):
    rep, bthw, latc = e1_ref.shape
    d = w2_ref.shape[1]
    sqrt_ac = coef_ref[0]                     # SMEM scalars: no recompile per t
    sqrt_om = coef_ref[1]

    # --- VAE-style encode: patch rows -> latent mean / logvar --------------
    xp = xp_ref[...]                                         # (BT*HW, PDIM)
    mean = jnp.dot(xp, wmu_ref[...],
                   preferred_element_type=jnp.float32) + bmu_ref[...]
    logvar = jnp.dot(xp, wlv_ref[...],
                     preferred_element_type=jnp.float32) + blv_ref[...]
    std = jnp.exp(0.5 * logvar)                              # (BT*HW, LATC)

    # --- repeat_times reparam samples + DDIM add_noise (all rows at once) --
    z = (mean[None, :, :] + std[None, :, :] * e1_ref[...]) * 0.18215
    noisy = sqrt_ac * z + sqrt_om * e2_ref[...]              # (REP, BT*HW, LATC)
    lat = noisy.reshape(rep * bthw, latc)                    # (256, 4)

    # --- UNet-style up-block feature over all REP*BT*HW rows ---------------
    # K=4 projection kept f32; main D x D matmul runs bf16 on the MXU with
    # f32 accumulation (elementwise math stays f32 for v5e).
    h = jnp.dot(lat, w1_ref[...],
                preferred_element_type=jnp.float32) + ctx_ref[...]
    h = jax.nn.gelu(h, approximate=True)                     # (256, D) f32
    f = jnp.dot(h.astype(jnp.bfloat16), w2_ref[...],
                preferred_element_type=jnp.float32)          # (256, D) f32

    # --- torch.mean(f, dim=2) over the repeat dimension ---------------------
    f_tok = jnp.sum(f.reshape(rep, bthw, d), axis=0) * (1.0 / rep)   # (64, D)
    f_out_ref[...] = f_tok                                   # lane-dense store

    # --- bilinear grid_sample of query points as one matmul -----------------
    q_out_ref[...] = jnp.dot(wq_ref[...], f_tok,
                             preferred_element_type=jnp.float32)


def fused_call(coefs, xp, params, eps_enc, eps_noise, ctx, wq, bt):
    bthw = bt * HW
    nq = wq.shape[0]
    return pl.pallas_call(
        _fused_kernel,
        out_shape=(jax.ShapeDtypeStruct((bthw, D), jnp.float32),
                   jax.ShapeDtypeStruct((nq, D), jnp.float32)),
        grid=(1,),
        in_specs=[
            pl.BlockSpec(memory_space=pltpu.MemorySpace.SMEM),       # coefs
            pl.BlockSpec((bthw, PDIM), lambda i: (0, 0)),            # xp
            pl.BlockSpec((PDIM, LATC), lambda i: (0, 0)),            # W_mu
            pl.BlockSpec((1, LATC), lambda i: (0, 0)),               # b_mu
            pl.BlockSpec((PDIM, LATC), lambda i: (0, 0)),            # W_lv
            pl.BlockSpec((1, LATC), lambda i: (0, 0)),               # b_lv
            pl.BlockSpec((REP, bthw, LATC), lambda i: (0, 0, 0)),    # eps_enc
            pl.BlockSpec((REP, bthw, LATC), lambda i: (0, 0, 0)),    # eps_noise
            pl.BlockSpec((LATC, D), lambda i: (0, 0)),               # W_unet1
            pl.BlockSpec((1, D), lambda i: (0, 0)),                  # ctx
            pl.BlockSpec((D, D), lambda i: (0, 0)),                  # W_unet2 bf16
            pl.BlockSpec((nq, bthw), lambda i: (0, 0)),              # wq
        ],
        out_specs=(pl.BlockSpec((bthw, D), lambda i: (0, 0)),
                   pl.BlockSpec((nq, D), lambda i: (0, 0))),
        compiler_params=pltpu.CompilerParams(
            dimension_semantics=("arbitrary",)),
        # TODO(synk): on v7x (2 TCs) a production-size workload should split
        #             the B*T axis across cores; at these toy sizes one fused
        #             grid=(1,) launch is the right trade-off.
    )(coefs, xp, params["W_mu"], params["b_mu"], params["W_lv"],
      params["b_lv"], eps_enc, eps_noise, params["W_unet1"], ctx,
      params["W_unet2"], wq)


# ---------------- parameters & forward -----------------------------------
def init_params(key):
    ks = jax.random.split(key, 7)
    return {
        "W_mu": jax.random.normal(ks[0], (PDIM, LATC), jnp.float32) * 0.05,
        "b_mu": jax.random.normal(ks[1], (1, LATC), jnp.float32) * 0.01,
        "W_lv": jax.random.normal(ks[2], (PDIM, LATC), jnp.float32) * 0.05,
        "b_lv": jnp.full((1, LATC), -1.0, jnp.float32),
        "text_embeds": jax.random.normal(ks[3], (TEXT_LEN, TEXT_DIM), jnp.float32),
        "W_text": jax.random.normal(ks[4], (TEXT_DIM, D), jnp.float32) * 0.05,
        "W_unet1": jax.random.normal(ks[5], (LATC, D), jnp.float32) * 0.2,
        # bf16 MXU operand (halves weight DMA, f32 accumulation in-kernel)
        "W_unet2": (jax.random.normal(ks[6], (D, D), jnp.float32)
                    / math.sqrt(D)).astype(jnp.bfloat16),
    }


def forward(params, video, queries, t=51):
    """video: [B,T,C,H,W] float32 in [0,255] (torch NCHW layout);
       queries: [B,N,3] = (t, x, y) in original-pixel coords.
       Returns (f [B,T,D,FH,FW], query_features [B,N,D])."""
    bv, tv, cv, hi, wi = video.shape
    bt = bv * tv
    btc = bt * cv

    # DDIM add_noise coefficients, kept on device (no float()/host sync, no
    # per-timestep recompile) and delivered to the kernel through SMEM.
    ac = alphas_cumprod()
    a_t = ac[t]
    coefs = jnp.stack([jnp.sqrt(a_t), jnp.sqrt(1.0 - a_t)]).astype(jnp.float32)

    # 1) /255, separable bilinear resize to SIZE, *2-1  (Pallas kernel 1)
    rh = resize_matrix(hi, SIZE[0])                     # (32, H_in)
    rw_t = resize_matrix(wi, SIZE[1]).T                 # (W_in, 32)
    x2d = video.reshape(btc * hi, wi)
    frames = resize_call(x2d, rw_t, rh, btc)            # (B*T*C, 32, 32)

    # 2) patchify: 8x8 stride-8 patches -> (BT*HW, PDIM) rows
    # TODO(synk): pure layout glue (49 KB); could be folded into the kernels
    #             via strided loads, kept in XLA for simplicity.
    xp = (frames.reshape(bt, cv, FH, PATCH, FW, PATCH)
          .transpose(0, 2, 4, 1, 3, 5)
          .reshape(bt * HW, PDIM))

    # 3) synthetic noise for REP reparam samples + DDIM noise
    # TODO(synk): fixed key = deterministic stand-in for latent_dist.sample().
    k1, k2 = jax.random.split(jax.random.PRNGKey(1234))
    eps_enc = jax.random.normal(k1, (REP, bt * HW, LATC), jnp.float32)
    eps_noise = jax.random.normal(k2, (REP, bt * HW, LATC), jnp.float32)

    # 4) '' text-embedding context + timestep embedding (tiny glue)
    ctx = (params["text_embeds"].mean(axis=0) @ params["W_text"]) / math.sqrt(TEXT_DIM)
    ctx = (ctx + jnp.sin(t * jnp.arange(D, dtype=jnp.float32) / D)).reshape(1, D)

    # 5) grid_sample weights for the query points (folded batch/frame pick)
    wq = build_sample_weights(queries, hi, wi, bv, tv)       # (B*N, BT*HW)

    # 6) fused encode + add_noise + UNet feature + repeat-mean + grid_sample
    f_tok, qflat = fused_call(coefs, xp, params, eps_enc, eps_noise,
                              ctx, wq, bt)

    # outputs back in torch NCHW layout
    f = f_tok.reshape(bv, tv, FH, FW, D).transpose(0, 1, 4, 2, 3)
    qfeat = qflat.reshape(bv, -1, D)
    return f, qfeat


# ---------------- main ----------------------------------------------------
if __name__ == "__main__":
    key = jax.random.PRNGKey(0)
    kv, kq, kp = jax.random.split(key, 3)

    video = jax.random.uniform(kv, (B, T, C, H_IN, W_IN), jnp.float32,
                               0.0, 255.0)
    kt, kx, ky = jax.random.split(kq, 3)
    qt = jax.random.randint(kt, (B, N), 0, T).astype(jnp.float32)
    qx = jax.random.uniform(kx, (B, N), jnp.float32, 0.0, float(W_IN))
    qy = jax.random.uniform(ky, (B, N), jnp.float32, 0.0, float(H_IN))
    queries = jnp.stack([qt, qx, qy], axis=-1)

    params = init_params(kp)
    fwd = jax.jit(forward)
    f, qfeat = fwd(params, video, queries)
    jax.block_until_ready((f, qfeat))

    assert f.shape == (B, T, D, FH, FW), f.shape
    assert qfeat.shape == (B, N, D), qfeat.shape
    assert bool(jnp.all(jnp.isfinite(f))) and bool(jnp.all(jnp.isfinite(qfeat)))
    print("KERNEL_OK")
</pallas_src>

<mosaic_0001>
module attributes {stable_mosaic.version = 11 : i64} {
  func.func @_resize_kernel(%arg0: i32, %arg1: memref<480x40xf32, #tpu.memory_space<vmem>>, %arg2: memref<40x32xf32, #tpu.memory_space<vmem>>, %arg3: memref<32x40xf32, #tpu.memory_space<vmem>>, %arg4: memref<12x32x32xf32, #tpu.memory_space<vmem>>) attributes {dimension_semantics = [#tpu.dimension_semantics<arbitrary>], iteration_bounds = array<i64: 1>, scalar_prefetch = 0 : i64, scratch_operands = 0 : i64, tpu.core_type = #tpu.core_type<tc>, window_params = [{pipeline_mode = #tpu.pipeline_mode<synchronous>, transform_indices = @transform_0, window_bounds = array<i64: 480, 40>}, {pipeline_mode = #tpu.pipeline_mode<synchronous>, transform_indices = @transform_1, window_bounds = array<i64: 40, 32>}, {pipeline_mode = #tpu.pipeline_mode<synchronous>, transform_indices = @transform_2, window_bounds = array<i64: 32, 40>}, {pipeline_mode = #tpu.pipeline_mode<synchronous>, transform_indices = @transform_3, window_bounds = array<i64: 12, 32, 32>}]} {
    %c0 = arith.constant 0 : index
    %c0_0 = arith.constant 0 : index
    %0 = vector.load %arg1[%c0, %c0_0] : memref<480x40xf32, #tpu.memory_space<vmem>>, vector<480x40xf32>
    %cst = arith.constant 0.00392156886 : f32
    %1 = vector.broadcast %cst : f32 to vector<480x40xf32>
    %2 = arith.mulf %0, %1 : vector<480x40xf32>
    %c0_1 = arith.constant 0 : index
    %c0_2 = arith.constant 0 : index
    %3 = vector.load %arg2[%c0_1, %c0_2] : memref<40x32xf32, #tpu.memory_space<vmem>>, vector<40x32xf32>
    %cst_3 = arith.constant dense<0.000000e+00> : vector<480x32xf32>
    %4 = tpu.matmul %2, %3, %cst_3 {dimension_numbers = #tpu.dot_dimension_numbers<[1], [0], [0], [1], [0, 0, 1, 1], [], []>} : vector<480x40xf32>, vector<40x32xf32>, vector<480x32xf32> -> vector<480x32xf32>
    %c0_4 = arith.constant 0 : index
    %c0_5 = arith.constant 0 : index
    %5 = vector.load %arg3[%c0_4, %c0_5] : memref<32x40xf32, #tpu.memory_space<vmem>>, vector<32x40xf32>
    %6 = vector.extract_strided_slice %4 {offsets = [0, 0], sizes = [40, 32], strides = [1, 1]} : vector<480x32xf32> to vector<40x32xf32>
    %cst_6 = arith.constant dense<0.000000e+00> : vector<32x32xf32>
    %7 = tpu.matmul %5, %6, %cst_6 {dimension_numbers = #tpu.dot_dimension_numbers<[1], [0], [0], [1], [0, 0, 1, 1], [], []>} : vector<32x40xf32>, vector<40x32xf32>, vector<32x32xf32> -> vector<32x32xf32>
    %cst_7 = arith.constant 2.000000e+00 : f32
    %8 = vector.broadcast %cst_7 : f32 to vector<32x32xf32>
    %9 = arith.mulf %7, %8 : vector<32x32xf32>
    %cst_8 = arith.constant 1.000000e+00 : f32
    %10 = vector.broadcast %cst_8 : f32 to vector<32x32xf32>
    %11 = arith.subf %9, %10 : vector<32x32xf32>
    %c0_9 = arith.constant 0 : index
    %c0_10 = arith.constant 0 : index
    %c0_11 = arith.constant 0 : index
    %12 = vector.load %arg4[%c0_9, %c0_10, %c0_11] : memref<12x32x32xf32, #tpu.memory_space<vmem>>, vector<1x32x32xf32>
    %13 = vector.shape_cast %12 : vector<1x32x32xf32> to vector<32x32xf32>
    %14 = vector.shape_cast %11 : vector<32x32xf32> to vector<1x32x32xf32>
    tpu.vector_store %arg4[%c0_9, %c0_10, %c0_11], %14 {strides = array<i32>} : memref<12x32x32xf32, #tpu.memory_space<vmem>>, vector<1x32x32xf32>,
    %15 = vector.extract_strided_slice %4 {offsets = [40, 0], sizes = [40, 32], strides = [1, 1]} : vector<480x32xf32> to vector<40x32xf32>
    %cst_12 = arith.constant dense<0.000000e+00> : vector<32x32xf32>
    %16 = tpu.matmul %5, %15, %cst_12 {dimension_numbers = #tpu.dot_dimension_numbers<[1], [0], [0], [1], [0, 0, 1, 1], [], []>} : vector<32x40xf32>, vector<40x32xf32>, vector<32x32xf32> -> vector<32x32xf32>
    %cst_13 = arith.constant 2.000000e+00 : f32
    %17 = vector.broadcast %cst_13 : f32 to vector<32x32xf32>
    %18 = arith.mulf %16, %17 : vector<32x32xf32>
    %cst_14 = arith.constant 1.000000e+00 : f32
    %19 = vector.broadcast %cst_14 : f32 to vector<32x32xf32>
    %20 = arith.subf %18, %19 : vector<32x32xf32>
    %c1 = arith.constant 1 : index
    %c0_15 = arith.constant 0 : index
    %c0_16 = arith.constant 0 : index
    %21 = vector.load %arg4[%c1, %c0_15, %c0_16] : memref<12x32x32xf32, #tpu.memory_space<vmem>>, vector<1x32x32xf32>
    %22 = vector.shape_cast %21 : vector<1x32x32xf32> to vector<32x32xf32>
    %23 = vector.shape_cast %20 : vector<32x32xf32> to vector<1x32x32xf32>
    tpu.vector_store %arg4[%c1, %c0_15, %c0_16], %23 {strides = array<i32>} : memref<12x32x32xf32, #tpu.memory_space<vmem>>, vector<1x32x32xf32>,
    %24 = vector.extract_strided_slice %4 {offsets = [80, 0], sizes = [40, 32], strides = [1, 1]} : vector<480x32xf32> to vector<40x32xf32>
    %cst_17 = arith.constant dense<0.000000e+00> : vector<32x32xf32>
    %25 = tpu.matmul %5, %24, %cst_17 {dimension_numbers = #tpu.dot_dimension_numbers<[1], [0], [0], [1], [0, 0, 1, 1], [], []>} : vector<32x40xf32>, vector<40x32xf32>, vector<32x32xf32> -> vector<32x32xf32>
    %cst_18 = arith.constant 2.000000e+00 : f32
    %26 = vector.broadcast %cst_18 : f32 to vector<32x32xf32>
    %27 = arith.mulf %25, %26 : vector<32x32xf32>
    %cst_19 = arith.constant 1.000000e+00 : f32
    %28 = vector.broadcast %cst_19 : f32 to vector<32x32xf32>
    %29 = arith.subf %27, %28 : vector<32x32xf32>
    %c2 = arith.constant 2 : index
    %c0_20 = arith.constant 0 : index
    %c0_21 = arith.constant 0 : index
    %30 = vector.load %arg4[%c2, %c0_20, %c0_21] : memref<12x32x32xf32, #tpu.memory_space<vmem>>, vector<1x32x32xf32>
    %31 = vector.shape_cast %30 : vector<1x32x32xf32> to vector<32x32xf32>
    %32 = vector.shape_cast %29 : vector<32x32xf32> to vector<1x32x32xf32>
    tpu.vector_store %arg4[%c2, %c0_20, %c0_21], %32 {strides = array<i32>} : memref<12x32x32xf32, #tpu.memory_space<vmem>>, vector<1x32x32xf32>,
    %33 = vector.extract_strided_slice %4 {offsets = [120, 0], sizes = [40, 32], strides = [1, 1]} : vector<480x32xf32> to vector<40x32xf32>
    %cst_22 = arith.constant dense<0.000000e+00> : vector<32x32xf32>
    %34 = tpu.matmul %5, %33, %cst_22 {dimension_numbers = #tpu.dot_dimension_numbers<[1], [0], [0], [1], [0, 0, 1, 1], [], []>} : vector<32x40xf32>, vector<40x32xf32>, vector<32x32xf32> -> vector<32x32xf32>
    %cst_23 = arith.constant 2.000000e+00 : f32
    %35 = vector.broadcast %cst_23 : f32 to vector<32x32xf32>
    %36 = arith.mulf %34, %35 : vector<32x32xf32>
    %cst_24 = arith.constant 1.000000e+00 : f32
    %37 = vector.broadcast %cst_24 : f32 to vector<32x32xf32>
    %38 = arith.subf %36, %37 : vector<32x32xf32>
    %c3 = arith.constant 3 : index
    %c0_25 = arith.constant 0 : index
    %c0_26 = arith.constant 0 : index
    %39 = vector.load %arg4[%c3, %c0_25, %c0_26] : memref<12x32x32xf32, #tpu.memory_space<vmem>>, vector<1x32x32xf32>
    %40 = vector.shape_cast %39 : vector<1x32x32xf32> to vector<32x32xf32>
    %41 = vector.shape_cast %38 : vector<32x32xf32> to vector<1x32x32xf32>
    tpu.vector_store %arg4[%c3, %c0_25, %c0_26], %41 {strides = array<i32>} : memref<12x32x32xf32, #tpu.memory_space<vmem>>, vector<1x32x32xf32>,
    %42 = vector.extract_strided_slice %4 {offsets = [160, 0], sizes = [40, 32], strides = [1, 1]} : vector<480x32xf32> to vector<40x32xf32>
    %cst_27 = arith.constant dense<0.000000e+00> : vector<32x32xf32>
    %43 = tpu.matmul %5, %42, %cst_27 {dimension_numbers = #tpu.dot_dimension_numbers<[1], [0], [0], [1], [0, 0, 1, 1], [], []>} : vector<32x40xf32>, vector<40x32xf32>, vector<32x32xf32> -> vector<32x32xf32>
    %cst_28 = arith.constant 2.000000e+00 : f32
    %44 = vector.broadcast %cst_28 : f32 to vector<32x32xf32>
    %45 = arith.mulf %43, %44 : vector<32x32xf32>
    %cst_29 = arith.constant 1.000000e+00 : f32
    %46 = vector.broadcast %cst_29 : f32 to vector<32x32xf32>
    %47 = arith.subf %45, %46 : vector<32x32xf32>
    %c4 = arith.constant 4 : index
    %c0_30 = arith.constant 0 : index
    %c0_31 = arith.constant 0 : index
    %48 = vector.load %arg4[%c4, %c0_30, %c0_31] : memref<12x32x32xf32, #tpu.memory_space<vmem>>, vector<1x32x32xf32>
    %49 = vector.shape_cast %48 : vector<1x32x32xf32> to vector<32x32xf32>
    %50 = vector.shape_cast %47 : vector<32x32xf32> to vector<1x32x32xf32>
    tpu.vector_store %arg4[%c4, %c0_30, %c0_31], %50 {strides = array<i32>} : memref<12x32x32xf32, #tpu.memory_space<vmem>>, vector<1x32x32xf32>,
    %51 = vector.extract_strided_slice %4 {offsets = [200, 0], sizes = [40, 32], strides = [1, 1]} : vector<480x32xf32> to vector<40x32xf32>
    %cst_32 = arith.constant dense<0.000000e+00> : vector<32x32xf32>
    %52 = tpu.matmul %5, %51, %cst_32 {dimension_numbers = #tpu.dot_dimension_numbers<[1], [0], [0], [1], [0, 0, 1, 1], [], []>} : vector<32x40xf32>, vector<40x32xf32>, vector<32x32xf32> -> vector<32x32xf32>
    %cst_33 = arith.constant 2.000000e+00 : f32
    %53 = vector.broadcast %cst_33 : f32 to vector<32x32xf32>
    %54 = arith.mulf %52, %53 : vector<32x32xf32>
    %cst_34 = arith.constant 1.000000e+00 : f32
    %55 = vector.broadcast %cst_34 : f32 to vector<32x32xf32>
    %56 = arith.subf %54, %55 : vector<32x32xf32>
    %c5 = arith.constant 5 : index
    %c0_35 = arith.constant 0 : index
    %c0_36 = arith.constant 0 : index
    %57 = vector.load %arg4[%c5, %c0_35, %c0_36] : memref<12x32x32xf32, #tpu.memory_space<vmem>>, vector<1x32x32xf32>
    %58 = vector.shape_cast %57 : vector<1x32x32xf32> to vector<32x32xf32>
    %59 = vector.shape_cast %56 : vector<32x32xf32> to vector<1x32x32xf32>
    tpu.vector_store %arg4[%c5, %c0_35, %c0_36], %59 {strides = array<i32>} : memref<12x32x32xf32, #tpu.memory_space<vmem>>, vector<1x32x32xf32>,
    %60 = vector.extract_strided_slice %4 {offsets = [240, 0], sizes = [40, 32], strides = [1, 1]} : vector<480x32xf32> to vector<40x32xf32>
    %cst_37 = arith.constant dense<0.000000e+00> : vector<32x32xf32>
    %61 = tpu.matmul %5, %60, %cst_37 {dimension_numbers = #tpu.dot_dimension_numbers<[1], [0], [0], [1], [0, 0, 1, 1], [], []>} : vector<32x40xf32>, vector<40x32xf32>, vector<32x32xf32> -> vector<32x32xf32>
    %cst_38 = arith.constant 2.000000e+00 : f32
    %62 = vector.broadcast %cst_38 : f32 to vector<32x32xf32>
    %63 = arith.mulf %61, %62 : vector<32x32xf32>
    %cst_39 = arith.constant 1.000000e+00 : f32
    %64 = vector.broadcast %cst_39 : f32 to vector<32x32xf32>
    %65 = arith.subf %63, %64 : vector<32x32xf32>
    %c6 = arith.constant 6 : index
    %c0_40 = arith.constant 0 : index
    %c0_41 = arith.constant 0 : index
    %66 = vector.load %arg4[%c6, %c0_40, %c0_41] : memref<12x32x32xf32, #tpu.memory_space<vmem>>, vector<1x32x32xf32>
    %67 = vector.shape_cast %66 : vector<1x32x32xf32> to vector<32x32xf32>
    %68 = vector.shape_cast %65 : vector<32x32xf32> to vector<1x32x32xf32>
    tpu.vector_store %arg4[%c6, %c0_40, %c0_41], %68 {strides = array<i32>} : memref<12x32x32xf32, #tpu.memory_space<vmem>>, vector<1x32x32xf32>,
    %69 = vector.extract_strided_slice %4 {offsets = [280, 0], sizes = [40, 32], strides = [1, 1]} : vector<480x32xf32> to vector<40x32xf32>
    %cst_42 = arith.constant dense<0.000000e+00> : vector<32x32xf32>
    %70 = tpu.matmul %5, %69, %cst_42 {dimension_numbers = #tpu.dot_dimension_numbers<[1], [0], [0], [1], [0, 0, 1, 1], [], []>} : vector<32x40xf32>, vector<40x32xf32>, vector<32x32xf32> -> vector<32x32xf32>
    %cst_43 = arith.constant 2.000000e+00 : f32
    %71 = vector.broadcast %cst_43 : f32 to vector<32x32xf32>
    %72 = arith.mulf %70, %71 : vector<32x32xf32>
    %cst_44 = arith.constant 1.000000e+00 : f32
    %73 = vector.broadcast %cst_44 : f32 to vector<32x32xf32>
    %74 = arith.subf %72, %73 : vector<32x32xf32>
    %c7 = arith.constant 7 : index
    %c0_45 = arith.constant 0 : index
    %c0_46 = arith.constant 0 : index
    %75 = vector.load %arg4[%c7, %c0_45, %c0_46] : memref<12x32x32xf32, #tpu.memory_space<vmem>>, vector<1x32x32xf32>
    %76 = vector.shape_cast %75 : vector<1x32x32xf32> to vector<32x32xf32>
    %77 = vector.shape_cast %74 : vector<32x32xf32> to vector<1x32x32xf32>
    tpu.vector_store %arg4[%c7, %c0_45, %c0_46], %77 {strides = array<i32>} : memref<12x32x32xf32, #tpu.memory_space<vmem>>, vector<1x32x32xf32>,
    %78 = vector.extract_strided_slice %4 {offsets = [320, 0], sizes = [40, 32], strides = [1, 1]} : vector<480x32xf32> to vector<40x32xf32>
    %cst_47 = arith.constant dense<0.000000e+00> : vector<32x32xf32>
    %79 = tpu.matmul %5, %78, %cst_47 {dimension_numbers = #tpu.dot_dimension_numbers<[1], [0], [0], [1], [0, 0, 1, 1], [], []>} : vector<32x40xf32>, vector<40x32xf32>, vector<32x32xf32> -> vector<32x32xf32>
    %cst_48 = arith.constant 2.000000e+00 : f32
    %80 = vector.broadcast %cst_48 : f32 to vector<32x32xf32>
    %81 = arith.mulf %79, %80 : vector<32x32xf32>
    %cst_49 = arith.constant 1.000000e+00 : f32
    %82 = vector.broadcast %cst_49 : f32 to vector<32x32xf32>
    %83 = arith.subf %81, %82 : vector<32x32xf32>
    %c8 = arith.constant 8 : index
    %c0_50 = arith.constant 0 : index
    %c0_51 = arith.constant 0 : index
    %84 = vector.load %arg4[%c8, %c0_50, %c0_51] : memref<12x32x32xf32, #tpu.memory_space<vmem>>, vector<1x32x32xf32>
    %85 = vector.shape_cast %84 : vector<1x32x32xf32> to vector<32x32xf32>
    %86 = vector.shape_cast %83 : vector<32x32xf32> to vector<1x32x32xf32>
    tpu.vector_store %arg4[%c8, %c0_50, %c0_51], %86 {strides = array<i32>} : memref<12x32x32xf32, #tpu.memory_space<vmem>>, vector<1x32x32xf32>,
    %87 = vector.extract_strided_slice %4 {offsets = [360, 0], sizes = [40, 32], strides = [1, 1]} : vector<480x32xf32> to vector<40x32xf32>
    %cst_52 = arith.constant dense<0.000000e+00> : vector<32x32xf32>
    %88 = tpu.matmul %5, %87, %cst_52 {dimension_numbers = #tpu.dot_dimension_numbers<[1], [0], [0], [1], [0, 0, 1, 1], [], []>} : vector<32x40xf32>, vector<40x32xf32>, vector<32x32xf32> -> vector<32x32xf32>
    %cst_53 = arith.constant 2.000000e+00 : f32
    %89 = vector.broadcast %cst_53 : f32 to vector<32x32xf32>
    %90 = arith.mulf %88, %89 : vector<32x32xf32>
    %cst_54 = arith.constant 1.000000e+00 : f32
    %91 = vector.broadcast %cst_54 : f32 to vector<32x32xf32>
    %92 = arith.subf %90, %91 : vector<32x32xf32>
    %c9 = arith.constant 9 : index
    %c0_55 = arith.constant 0 : index
    %c0_56 = arith.constant 0 : index
    %93 = vector.load %arg4[%c9, %c0_55, %c0_56] : memref<12x32x32xf32, #tpu.memory_space<vmem>>, vector<1x32x32xf32>
    %94 = vector.shape_cast %93 : vector<1x32x32xf32> to vector<32x32xf32>
    %95 = vector.shape_cast %92 : vector<32x32xf32> to vector<1x32x32xf32>
    tpu.vector_store %arg4[%c9, %c0_55, %c0_56], %95 {strides = array<i32>} : memref<12x32x32xf32, #tpu.memory_space<vmem>>, vector<1x32x32xf32>,
    %96 = vector.extract_strided_slice %4 {offsets = [400, 0], sizes = [40, 32], strides = [1, 1]} : vector<480x32xf32> to vector<40x32xf32>
    %cst_57 = arith.constant dense<0.000000e+00> : vector<32x32xf32>
    %97 = tpu.matmul %5, %96, %cst_57 {dimension_numbers = #tpu.dot_dimension_numbers<[1], [0], [0], [1], [0, 0, 1, 1], [], []>} : vector<32x40xf32>, vector<40x32xf32>, vector<32x32xf32> -> vector<32x32xf32>
    %cst_58 = arith.constant 2.000000e+00 : f32
    %98 = vector.broadcast %cst_58 : f32 to vector<32x32xf32>
    %99 = arith.mulf %97, %98 : vector<32x32xf32>
    %cst_59 = arith.constant 1.000000e+00 : f32
    %100 = vector.broadcast %cst_59 : f32 to vector<32x32xf32>
    %101 = arith.subf %99, %100 : vector<32x32xf32>
    %c10 = arith.constant 10 : index
    %c0_60 = arith.constant 0 : index
    %c0_61 = arith.constant 0 : index
    %102 = vector.load %arg4[%c10, %c0_60, %c0_61] : memref<12x32x32xf32, #tpu.memory_space<vmem>>, vector<1x32x32xf32>
    %103 = vector.shape_cast %102 : vector<1x32x32xf32> to vector<32x32xf32>
    %104 = vector.shape_cast %101 : vector<32x32xf32> to vector<1x32x32xf32>
    tpu.vector_store %arg4[%c10, %c0_60, %c0_61], %104 {strides = array<i32>} : memref<12x32x32xf32, #tpu.memory_space<vmem>>, vector<1x32x32xf32>,
    %105 = vector.extract_strided_slice %4 {offsets = [440, 0], sizes = [40, 32], strides = [1, 1]} : vector<480x32xf32> to vector<40x32xf32>
    %cst_62 = arith.constant dense<0.000000e+00> : vector<32x32xf32>
    %106 = tpu.matmul %5, %105, %cst_62 {dimension_numbers = #tpu.dot_dimension_numbers<[1], [0], [0], [1], [0, 0, 1, 1], [], []>} : vector<32x40xf32>, vector<40x32xf32>, vector<32x32xf32> -> vector<32x32xf32>
    %cst_63 = arith.constant 2.000000e+00 : f32
    %107 = vector.broadcast %cst_63 : f32 to vector<32x32xf32>
    %108 = arith.mulf %106, %107 : vector<32x32xf32>
    %cst_64 = arith.constant 1.000000e+00 : f32
    %109 = vector.broadcast %cst_64 : f32 to vector<32x32xf32>
    %110 = arith.subf %108, %109 : vector<32x32xf32>
    %c11 = arith.constant 11 : index
    %c0_65 = arith.constant 0 : index
    %c0_66 = arith.constant 0 : index
    %111 = vector.load %arg4[%c11, %c0_65, %c0_66] : memref<12x32x32xf32, #tpu.memory_space<vmem>>, vector<1x32x32xf32>
    %112 = vector.shape_cast %111 : vector<1x32x32xf32> to vector<32x32xf32>
    %113 = vector.shape_cast %110 : vector<32x32xf32> to vector<1x32x32xf32>
    tpu.vector_store %arg4[%c11, %c0_65, %c0_66], %113 {strides = array<i32>} : memref<12x32x32xf32, #tpu.memory_space<vmem>>, vector<1x32x32xf32>,
    return
  }
  func.func @transform_0(%arg0: i32) -> (i32, i32) {
    %c0_i32 = arith.constant 0 : i32
    %c0_i32_0 = arith.constant 0 : i32
    %c0_i32_1 = arith.constant 0 : i32
    return %c0_i32, %c0_i32_0 : i32, i32
  }
  func.func @transform_1(%arg0: i32) -> (i32, i32) {
    %c0_i32 = arith.constant 0 : i32
    %c0_i32_0 = arith.constant 0 : i32
    %c0_i32_1 = arith.constant 0 : i32
    return %c0_i32, %c0_i32_0 : i32, i32
  }
  func.func @transform_2(%arg0: i32) -> (i32, i32) {
    %c0_i32 = arith.constant 0 : i32
    %c0_i32_0 = arith.constant 0 : i32
    %c0_i32_1 = arith.constant 0 : i32
    return %c0_i32, %c0_i32_0 : i32, i32
  }
  func.func @transform_3(%arg0: i32) -> (i32, i32, i32) {
    %c0_i32 = arith.constant 0 : i32
    %c0_i32_0 = arith.constant 0 : i32
    %c0_i32_1 = arith.constant 0 : i32
    %c0_i32_2 = arith.constant 0 : i32
    return %c0_i32, %c0_i32_0, %c0_i32_1 : i32, i32, i32
  }
}

module attributes {stable_mosaic.version = 11 : i64} {
  func.func @_fused_kernel(%arg0: i32, %arg1: memref<2xf32, #tpu.memory_space<smem>>, %arg2: memref<64x192xf32, #tpu.memory_space<vmem>>, %arg3: memref<192x4xf32, #tpu.memory_space<vmem>>, %arg4: memref<1x4xf32, #tpu.memory_space<vmem>>, %arg5: memref<192x4xf32, #tpu.memory_space<vmem>>, %arg6: memref<1x4xf32, #tpu.memory_space<vmem>>, %arg7: memref<4x64x4xf32, #tpu.memory_space<vmem>>, %arg8: memref<4x64x4xf32, #tpu.memory_space<vmem>>, %arg9: memref<4x128xf32, #tpu.memory_space<vmem>>, %arg10: memref<1x128xf32, #tpu.memory_space<vmem>>, %arg11: memref<128x128xbf16, #tpu.memory_space<vmem>>, %arg12: memref<16x64xf32, #tpu.memory_space<vmem>>, %arg13: memref<64x128xf32, #tpu.memory_space<vmem>>, %arg14: memref<16x128xf32, #tpu.memory_space<vmem>>) attributes {dimension_semantics = [#tpu.dimension_semantics<arbitrary>], iteration_bounds = array<i64: 1>, scalar_prefetch = 0 : i64, scratch_operands = 0 : i64, tpu.core_type = #tpu.core_type<tc>, window_params = [{transform_indices = @transform_0, window_bounds = array<i64: 2>}, {pipeline_mode = #tpu.pipeline_mode<synchronous>, transform_indices = @transform_1, window_bounds = array<i64: 64, 192>}, {pipeline_mode = #tpu.pipeline_mode<synchronous>, transform_indices = @transform_2, window_bounds = array<i64: 192, 4>}, {pipeline_mode = #tpu.pipeline_mode<synchronous>, transform_indices = @transform_3, window_bounds = array<i64: 1, 4>}, {pipeline_mode = #tpu.pipeline_mode<synchronous>, transform_indices = @transform_4, window_bounds = array<i64: 192, 4>}, {pipeline_mode = #tpu.pipeline_mode<synchronous>, transform_indices = @transform_5, window_bounds = array<i64: 1, 4>}, {pipeline_mode = #tpu.pipeline_mode<synchronous>, transform_indices = @transform_6, window_bounds = array<i64: 4, 64, 4>}, {pipeline_mode = #tpu.pipeline_mode<synchronous>, transform_indices = @transform_7, window_bounds = array<i64: 4, 64, 4>}, {pipeline_mode = #tpu.pipeline_mode<synchronous>, transform_indices = @transform_8, window_bounds = array<i64: 4, 128>}, {pipeline_mode = #tpu.pipeline_mode<synchronous>, transform_indices = @transform_9, window_bounds = array<i64: 1, 128>}, {pipeline_mode = #tpu.pipeline_mode<synchronous>, transform_indices = @transform_10, window_bounds = array<i64: 128, 128>}, {pipeline_mode = #tpu.pipeline_mode<synchronous>, transform_indices = @transform_11, window_bounds = array<i64: 16, 64>}, {pipeline_mode = #tpu.pipeline_mode<synchronous>, transform_indices = @transform_12, window_bounds = array<i64: 64, 128>}, {pipeline_mode = #tpu.pipeline_mode<synchronous>, transform_indices = @transform_13, window_bounds = array<i64: 16, 128>}]} {
    %c0 = arith.constant 0 : index
    %0 = memref.load %arg1[%c0] : memref<2xf32, #tpu.memory_space<smem>>
    %c1 = arith.constant 1 : index
    %1 = memref.load %arg1[%c1] : memref<2xf32, #tpu.memory_space<smem>>
    %c0_0 = arith.constant 0 : index
    %c0_1 = arith.constant 0 : index
    %2 = vector.load %arg2[%c0_0, %c0_1] : memref<64x192xf32, #tpu.memory_space<vmem>>, vector<64x192xf32>
    %c0_2 = arith.constant 0 : index
    %c0_3 = arith.constant 0 : index
    %3 = vector.load %arg3[%c0_2, %c0_3] : memref<192x4xf32, #tpu.memory_space<vmem>>, vector<192x4xf32>
    %cst = arith.constant dense<0.000000e+00> : vector<64x4xf32>
    %4 = tpu.matmul %2, %3, %cst {dimension_numbers = #tpu.dot_dimension_numbers<[1], [0], [0], [1], [0, 0, 1, 1], [], []>} : vector<64x192xf32>, vector<192x4xf32>, vector<64x4xf32> -> vector<64x4xf32>
    %c0_4 = arith.constant 0 : index
    %c0_5 = arith.constant 0 : index
    %5 = vector.load %arg4[%c0_4, %c0_5] : memref<1x4xf32, #tpu.memory_space<vmem>>, vector<1x4xf32>
    %6 = vector.broadcast %5 : vector<1x4xf32> to vector<64x4xf32>
    %7 = arith.addf %4, %6 : vector<64x4xf32>
    %c0_6 = arith.constant 0 : index
    %c0_7 = arith.constant 0 : index
    %8 = vector.load %arg5[%c0_6, %c0_7] : memref<192x4xf32, #tpu.memory_space<vmem>>, vector<192x4xf32>
    %cst_8 = arith.constant dense<0.000000e+00> : vector<64x4xf32>
    %9 = tpu.matmul %2, %8, %cst_8 {dimension_numbers = #tpu.dot_dimension_numbers<[1], [0], [0], [1], [0, 0, 1, 1], [], []>} : vector<64x192xf32>, vector<192x4xf32>, vector<64x4xf32> -> vector<64x4xf32>
    %c0_9 = arith.constant 0 : index
    %c0_10 = arith.constant 0 : index
    %10 = vector.load %arg6[%c0_9, %c0_10] : memref<1x4xf32, #tpu.memory_space<vmem>>, vector<1x4xf32>
    %11 = vector.broadcast %10 : vector<1x4xf32> to vector<64x4xf32>
    %12 = arith.addf %9, %11 : vector<64x4xf32>
    %cst_11 = arith.constant 5.000000e-01 : f32
    %13 = vector.broadcast %cst_11 : f32 to vector<64x4xf32>
    %14 = arith.mulf %13, %12 : vector<64x4xf32>
    %15 = math.exp %14 : vector<64x4xf32>
    %16 = vector.shape_cast %7 : vector<64x4xf32> to vector<1x64x4xf32>
    %17 = vector.shape_cast %15 : vector<64x4xf32> to vector<1x64x4xf32>
    %c0_12 = arith.constant 0 : index
    %c0_13 = arith.constant 0 : index
    %c0_14 = arith.constant 0 : index
    %18 = vector.load %arg7[%c0_12, %c0_13, %c0_14] : memref<4x64x4xf32, #tpu.memory_space<vmem>>, vector<4x64x4xf32>
    %19 = vector.broadcast %17 : vector<1x64x4xf32> to vector<4x64x4xf32>
    %20 = arith.mulf %19, %18 : vector<4x64x4xf32>
    %21 = vector.broadcast %16 : vector<1x64x4xf32> to vector<4x64x4xf32>
    %22 = arith.addf %21, %20 : vector<4x64x4xf32>
    %cst_15 = arith.constant 1.821500e-01 : f32
    %23 = vector.broadcast %cst_15 : f32 to vector<4x64x4xf32>
    %24 = arith.mulf %22, %23 : vector<4x64x4xf32>
    %25 = vector.broadcast %0 : f32 to vector<4x64x4xf32>
    %26 = arith.mulf %25, %24 : vector<4x64x4xf32>
    %c0_16 = arith.constant 0 : index
    %c0_17 = arith.constant 0 : index
    %c0_18 = arith.constant 0 : index
    %27 = vector.load %arg8[%c0_16, %c0_17, %c0_18] : memref<4x64x4xf32, #tpu.memory_space<vmem>>, vector<4x64x4xf32>
    %28 = vector.broadcast %1 : f32 to vector<4x64x4xf32>
    %29 = arith.mulf %28, %27 : vector<4x64x4xf32>
    %30 = arith.addf %26, %29 : vector<4x64x4xf32>
    %31 = vector.shape_cast %30 : vector<4x64x4xf32> to vector<256x4xf32>
    %c0_19 = arith.constant 0 : index
    %c0_20 = arith.constant 0 : index
    %32 = vector.load %arg9[%c0_19, %c0_20] : memref<4x128xf32, #tpu.memory_space<vmem>>, vector<4x128xf32>
    %cst_21 = arith.constant dense<0.000000e+00> : vector<256x128xf32>
    %33 = tpu.matmul %31, %32, %cst_21 {dimension_numbers = #tpu.dot_dimension_numbers<[1], [0], [0], [1], [0, 0, 1, 1], [], []>} : vector<256x4xf32>, vector<4x128xf32>, vector<256x128xf32> -> vector<256x128xf32>
    %c0_22 = arith.constant 0 : index
    %c0_23 = arith.constant 0 : index
    %34 = vector.load %arg10[%c0_22, %c0_23] : memref<1x128xf32, #tpu.memory_space<vmem>>, vector<1x128xf32>
    %35 = vector.broadcast %34 : vector<1x128xf32> to vector<256x128xf32>
    %36 = arith.addf %33, %35 : vector<256x128xf32>
    %37 = arith.mulf %36, %36 : vector<256x128xf32>
    %38 = arith.mulf %36, %37 : vector<256x128xf32>
    %cst_24 = arith.constant 4.471500e-02 : f32
    %39 = vector.broadcast %cst_24 : f32 to vector<256x128xf32>
    %40 = arith.mulf %39, %38 : vector<256x128xf32>
    %41 = arith.addf %36, %40 : vector<256x128xf32>
    %cst_25 = arith.constant 0.797884583 : f32
    %42 = vector.broadcast %cst_25 : f32 to vector<256x128xf32>
    %43 = arith.mulf %42, %41 : vector<256x128xf32>
    %44 = math.tanh %43 : vector<256x128xf32>
    %cst_26 = arith.constant 1.000000e+00 : f32
    %45 = vector.broadcast %cst_26 : f32 to vector<256x128xf32>
    %46 = arith.addf %45, %44 : vector<256x128xf32>
    %cst_27 = arith.constant 5.000000e-01 : f32
    %47 = vector.broadcast %cst_27 : f32 to vector<256x128xf32>
    %48 = arith.mulf %47, %46 : vector<256x128xf32>
    %49 = arith.mulf %36, %48 : vector<256x128xf32>
    %50 = arith.truncf %49 : vector<256x128xf32> to vector<256x128xbf16>
    %c0_28 = arith.constant 0 : index
    %c0_29 = arith.constant 0 : index
    %51 = vector.load %arg11[%c0_28, %c0_29] : memref<128x128xbf16, #tpu.memory_space<vmem>>, vector<128x128xbf16>
    %cst_30 = arith.constant dense<0.000000e+00> : vector<256x128xf32>
    %52 = tpu.matmul %50, %51, %cst_30 {dimension_numbers = #tpu.dot_dimension_numbers<[1], [0], [0], [1], [0, 0, 1, 1], [], []>} : vector<256x128xbf16>, vector<128x128xbf16>, vector<256x128xf32> -> vector<256x128xf32>
    %53 = vector.shape_cast %52 : vector<256x128xf32> to vector<4x64x128xf32>
    %cst_31 = arith.constant dense<0.000000e+00> : vector<64x128xf32>
    %54 = vector.multi_reduction <add>, %53, %cst_31 [0] : vector<4x64x128xf32> to vector<64x128xf32>
    %cst_32 = arith.constant 2.500000e-01 : f32
    %55 = vector.broadcast %cst_32 : f32 to vector<64x128xf32>
    %56 = arith.mulf %54, %55 : vector<64x128xf32>
    %c0_33 = arith.constant 0 : index
    %c0_34 = arith.constant 0 : index
    %57 = vector.load %arg13[%c0_33, %c0_34] : memref<64x128xf32, #tpu.memory_space<vmem>>, vector<64x128xf32>
    tpu.vector_store %arg13[%c0_33, %c0_34], %56 {strides = array<i32>} : memref<64x128xf32, #tpu.memory_space<vmem>>, vector<64x128xf32>,
    %c0_35 = arith.constant 0 : index
    %c0_36 = arith.constant 0 : index
    %58 = vector.load %arg12[%c0_35, %c0_36] : memref<16x64xf32, #tpu.memory_space<vmem>>, vector<16x64xf32>
    %cst_37 = arith.constant dense<0.000000e+00> : vector<16x128xf32>
    %59 = tpu.matmul %58, %56, %cst_37 {dimension_numbers = #tpu.dot_dimension_numbers<[1], [0], [0], [1], [0, 0, 1, 1], [], []>} : vector<16x64xf32>, vector<64x128xf32>, vector<16x128xf32> -> vector<16x128xf32>
    %c0_38 = arith.constant 0 : index
    %c0_39 = arith.constant 0 : index
    %60 = vector.load %arg14[%c0_38, %c0_39] : memref<16x128xf32, #tpu.memory_space<vmem>>, vector<16x128xf32>
    tpu.vector_store %arg14[%c0_38, %c0_39], %59 {strides = array<i32>} : memref<16x128xf32, #tpu.memory_space<vmem>>, vector<16x128xf32>,
    return
  }
  func.func @transform_0(%arg0: i32) -> i32 {
    %c0_i32 = arith.constant 0 : i32
    %c0_i32_0 = arith.constant 0 : i32
    return %c0_i32 : i32
  }
  func.func @transform_1(%arg0: i32) -> (i32, i32) {
    %c0_i32 = arith.constant 0 : i32
    %c0_i32_0 = arith.constant 0 : i32
    %c0_i32_1 = arith.constant 0 : i32
    return %c0_i32, %c0_i32_0 : i32, i32
  }
  func.func @transform_2(%arg0: i32) -> (i32, i32) {
    %c0_i32 = arith.constant 0 : i32
    %c0_i32_0 = arith.constant 0 : i32
    %c0_i32_1 = arith.constant 0 : i32
    return %c0_i32, %c0_i32_0 : i32, i32
  }
  func.func @transform_3(%arg0: i32) -> (i32, i32) {
    %c0_i32 = arith.constant 0 : i32
    %c0_i32_0 = arith.constant 0 : i32
    %c0_i32_1 = arith.constant 0 : i32
    return %c0_i32, %c0_i32_0 : i32, i32
  }
  func.func @transform_4(%arg0: i32) -> (i32, i32) {
    %c0_i32 = arith.constant 0 : i32
    %c0_i32_0 = arith.constant 0 : i32
    %c0_i32_1 = arith.constant 0 : i32
    return %c0_i32, %c0_i32_0 : i32, i32
  }
  func.func @transform_5(%arg0: i32) -> (i32, i32) {
    %c0_i32 = arith.constant 0 : i32
    %c0_i32_0 = arith.constant 0 : i32
    %c0_i32_1 = arith.constant 0 : i32
    return %c0_i32, %c0_i32_0 : i32, i32
  }
  func.func @transform_6(%arg0: i32) -> (i32, i32, i32) {
    %c0_i32 = arith.constant 0 : i32
    %c0_i32_0 = arith.constant 0 : i32
    %c0_i32_1 = arith.constant 0 : i32
    %c0_i32_2 = arith.constant 0 : i32
    return %c0_i32, %c0_i32_0, %c0_i32_1 : i32, i32, i32
  }
  func.func @transform_7(%arg0: i32) -> (i32, i32, i32) {
    %c0_i32 = arith.constant 0 : i32
    %c0_i32_0 = arith.constant 0 : i32
    %c0_i32_1 = arith.constant 0 : i32
    %c0_i32_2 = arith.constant 0 : i32
    return %c0_i32, %c0_i32_0, %c0_i32_1 : i32, i32, i32
  }
  func.func @transform_8(%arg0: i32) -> (i32, i32) {
    %c0_i32 = arith.constant 0 : i32
    %c0_i32_0 = arith.constant 0 : i32
    %c0_i32_1 = arith.constant 0 : i32
    return %c0_i32, %c0_i32_0 : i32, i32
  }
  func.func @transform_9(%arg0: i32) -> (i32, i32) {
    %c0_i32 = arith.constant 0 : i32
    %c0_i32_0 = arith.constant 0 : i32
    %c0_i32_1 = arith.constant 0 : i32
    return %c0_i32, %c0_i32_0 : i32, i32
  }
  func.func @transform_10(%arg0: i32) -> (i32, i32) {
    %c0_i32 = arith.constant 0 : i32
    %c0_i32_0 = arith.constant 0 : i32
    %c0_i32_1 = arith.constant 0 : i32
    return %c0_i32, %c0_i32_0 : i32, i32
  }
  func.func @transform_11(%arg0: i32) -> (i32, i32) {
    %c0_i32 = arith.constant 0 : i32
    %c0_i32_0 = arith.constant 0 : i32
    %c0_i32_1 = arith.constant 0 : i32
    return %c0_i32, %c0_i32_0 : i32, i32
  }
  func.func @transform_12(%arg0: i32) -> (i32, i32) {
    %c0_i32 = arith.constant 0 : i32
    %c0_i32_0 = arith.constant 0 : i32
    %c0_i32_1 = arith.constant 0 : i32
    return %c0_i32, %c0_i32_0 : i32, i32
  }
  func.func @transform_13(%arg0: i32) -> (i32, i32) {
    %c0_i32 = arith.constant 0 : i32
    %c0_i32_0 = arith.constant 0 : i32
    %c0_i32_1 = arith.constant 0 : i32
    return %c0_i32, %c0_i32_0 : i32, i32
  }
}

</mosaic_0001>

<llo_original>
// kernel: forward.2
$region0: #{forward.2}
  #allocation0 [shape = 'u32[]', space=smem, size = 0x4, offset = 0x4, fixed_abs, tag = 'smem constant byte address 0x4 - core index']
  #allocation1 [shape = 'u32[72,128]{1,0:T(1,128)}', space=vmem, size = 0x9000, scoped, tag = 'internal scratch']
  %s0 = inlined_call_operand.hbm [shape: f32[480,40], index: 0, kind: input, shape index: {}]
  %s1 = inlined_call_operand.vmem [shape: f32[40,32], index: 1, kind: input, shape index: {}]
  %s2 = inlined_call_operand.vmem [shape: f32[32,40], index: 2, kind: input, shape index: {}]
  %s3 = inlined_call_operand.vmem [shape: f32[12,32,32], index: 3, kind: output, shape index: {}]
  %s4 = sld [smem:[#allocation0]]
  $region26: #{forward.2} parent=0
    _
  %s6 = ssub.s32 1, %s4
  %s7 = scalar_select 0, %s6, %s4
  $region1: #{forward.2} parent=0
    #allocation2 [shape = 'u8[245760]{0}', space=vmem, size = 0x3c000, scoped, tag = 'input window, operand 0, single buffered']
    #allocation3 [shape = 's32[1]{0}', space=sflag, size = 0x4, scoped, tag = 'scoped memory for forward.2']
    %8 = vsyncpa [#allocation3], 0
    // Predicated region
    $region2: #{forward.2} parent=1 // pred_check
      _
    $region3: #{forward.2} parent=1 // pred_check_branch
      %10 = sbr.rel (0) target = $region5
    $region4: #{forward.2} parent=1 // pred_region
      %12 = vsyncadd [#allocation3], 0
      %s13 = sshll.u32 %s0, 4
      %s14 = int_to_ptr.hbm [resolvable:$true] %s13
      %s15 = sshll.u32 [#allocation2], 4
      %s16 = int_to_ptr.vmem [resolvable:$true] %s15
      %21 = dma.hbm_to_vmem [thread:$0]  %s14, 7680, %s16, [#allocation3], 128, 128, 8
    $region5: #{forward.2} parent=1 // pred_fallthru
      _
    // Predicated region
    $region6: #{forward.2} parent=1 // pred_check
      _
    $region7: #{forward.2} parent=1 // pred_check_branch
      %23 = sbr.rel (0) target = $region9
    $region8: #{forward.2} parent=1 // pred_region
      _
    $region9: #{forward.2} parent=1 // pred_fallthru
      _
    // Predicated region
    $region10: #{forward.2} parent=1 // pred_check
      _
    $region11: #{forward.2} parent=1 // pred_check_branch
      %25 = sbr.rel (0) target = $region13
    $region12: #{forward.2} parent=1 // pred_region
      _
    $region13: #{forward.2} parent=1 // pred_fallthru
      _
    // Predicated region
    $region14: #{forward.2} parent=1 // pred_check
      _
    $region15: #{forward.2} parent=1 // pred_check_branch
      %27 = sbr.rel (0) target = $region17
    $region16: #{forward.2} parent=1 // pred_region
      %29 = dma.done [#allocation3], 7680
    $region17: #{forward.2} parent=1 // pred_fallthru
      _
    %v30 = vld [vmem:[#allocation2] sm:$0xff]
    %v31 = vld [vmem:[#allocation2 + $0x8] sm:$0xff]
    %v32 = vld [vmem:[#allocation2 + $0x10] sm:$0xff]
    %v33 = vld [vmem:[#allocation2 + $0x18] sm:$0xff]
    %v34 = vld [vmem:[#allocation2 + $0x20] sm:$0xff]
    %v35 = vld [vmem:[#allocation2 + $0x28] sm:$0xff]
    %v36 = vld [vmem:[#allocation2 + $0x30] sm:$0xff]
    %v37 = vld [vmem:[#allocation2 + $0x38] sm:$0xff]
    %v38 = vld [vmem:[#allocation2 + $0x40] sm:$0xff]
    %v39 = vld [vmem:[#allocation2 + $0x48] sm:$0xff]
    %v40 = vld [vmem:[#allocation2 + $0x50] sm:$0xff]
    %v41 = vld [vmem:[#allocation2 + $0x58] sm:$0xff]
    %v42 = vld [vmem:[#allocation2 + $0x60] sm:$0xff]
    %v43 = vld [vmem:[#allocation2 + $0x68] sm:$0xff]
    %v44 = vld [vmem:[#allocation2 + $0x70] sm:$0xff]
    %v45 = vld [vmem:[#allocation2 + $0x78] sm:$0xff]
    %v46 = vld [vmem:[#allocation2 + $0x80] sm:$0xff]
    %v47 = vld [vmem:[#allocation2 + $0x88] sm:$0xff]
    %v48 = vld [vmem:[#allocation2 + $0x90] sm:$0xff]
    %v49 = vld [vmem:[#allocation2 + $0x98] sm:$0xff]
    %v50 = vld [vmem:[#allocation2 + $0xa0] sm:$0xff]
    %v51 = vld [vmem:[#allocation2 + $0xa8] sm:$0xff]
    %v52 = vld [vmem:[#allocation2 + $0xb0] sm:$0xff]
    %v53 = vld [vmem:[#allocation2 + $0xb8] sm:$0xff]
    %v54 = vld [vmem:[#allocation2 + $0xc0] sm:$0xff]
    %v55 = vld [vmem:[#allocation2 + $0xc8] sm:$0xff]
    %v56 = vld [vmem:[#allocation2 + $0xd0] sm:$0xff]
    %v57 = vld [vmem:[#allocation2 + $0xd8] sm:$0xff]
    %v58 = vld [vmem:[#allocation2 + $0xe0] sm:$0xff]
    %v59 = vld [vmem:[#allocation2 + $0xe8] sm:$0xff]
    %v60 = vld [vmem:[#allocation2 + $0xf0] sm:$0xff]
    %v61 = vld [vmem:[#allocation2 + $0xf8] sm:$0xff]
    %v62 = vld [vmem:[#allocation2 + $0x100] sm:$0xff]
    %v63 = vld [vmem:[#allocation2 + $0x108] sm:$0xff]
    %v64 = vld [vmem:[#allocation2 + $0x110] sm:$0xff]
    %v65 = vld [vmem:[#allocation2 + $0x118] sm:$0xff]
    %v66 = vld [vmem:[#allocation2 + $0x120] sm:$0xff]
    %v67 = vld [vmem:[#allocation2 + $0x128] sm:$0xff]
    %v68 = vld [vmem:[#allocation2 + $0x130] sm:$0xff]
    %v69 = vld [vmem:[#allocation2 + $0x138] sm:$0xff]
    %v70 = vld [vmem:[#allocation2 + $0x140] sm:$0xff]
    %v71 = vld [vmem:[#allocation2 + $0x148] sm:$0xff]
    %v72 = vld [vmem:[#allocation2 + $0x150] sm:$0xff]
    %v73 = vld [vmem:[#allocation2 + $0x158] sm:$0xff]
    %v74 = vld [vmem:[#allocation2 + $0x160] sm:$0xff]
    %v75 = vld [vmem:[#allocation2 + $0x168] sm:$0xff]
    %v76 = vld [vmem:[#allocation2 + $0x170] sm:$0xff]
    %v77 = vld [vmem:[#allocation2 + $0x178] sm:$0xff]
    %v78 = vld [vmem:[#allocation2 + $0x180] sm:$0xff]
    %v79 = vld [vmem:[#allocation2 + $0x188] sm:$0xff]
    %v80 = vld [vmem:[#allocation2 + $0x190] sm:$0xff]
    %v81 = vld [vmem:[#allocation2 + $0x198] sm:$0xff]
    %v82 = vld [vmem:[#allocation2 + $0x1a0] sm:$0xff]
    %v83 = vld [vmem:[#allocation2 + $0x1a8] sm:$0xff]
    %v84 = vld [vmem:[#allocation2 + $0x1b0] sm:$0xff]
    %v85 = vld [vmem:[#allocation2 + $0x1b8] sm:$0xff]
    %v86 = vld [vmem:[#allocation2 + $0x1c0] sm:$0xff]
    %v87 = vld [vmem:[#allocation2 + $0x1c8] sm:$0xff]
    %v88 = vld [vmem:[#allocation2 + $0x1d0] sm:$0xff]
    %v89 = vld [vmem:[#allocation2 + $0x1d8] sm:$0xff]
    %v90 = vmul.f32 %v30, 0.003921569
    %v91 = vmul.f32 %v31, 0.003921569
    %v92 = vmul.f32 %v32, 0.003921569
    %v93 = vmul.f32 %v33, 0.003921569
    %v94 = vmul.f32 %v34, 0.003921569
    %v95 = vmul.f32 %v35, 0.003921569
    %v96 = vmul.f32 %v36, 0.003921569
    %v97 = vmul.f32 %v37, 0.003921569
    %v98 = vmul.f32 %v38, 0.003921569
    %v99 = vmul.f32 %v39, 0.003921569
    %v100 = vmul.f32 %v40, 0.003921569
    %v101 = vmul.f32 %v41, 0.003921569
    %v102 = vmul.f32 %v42, 0.003921569
    %v103 = vmul.f32 %v43, 0.003921569
    %v104 = vmul.f32 %v44, 0.003921569
    %v105 = vmul.f32 %v45, 0.003921569
    %v106 = vmul.f32 %v46, 0.003921569
    %v107 = vmul.f32 %v47, 0.003921569
    %v108 = vmul.f32 %v48, 0.003921569
    %v109 = vmul.f32 %v49, 0.003921569
    %v110 = vmul.f32 %v50, 0.003921569
    %v111 = vmul.f32 %v51, 0.003921569
    %v112 = vmul.f32 %v52, 0.003921569
    %v113 = vmul.f32 %v53, 0.003921569
    %v114 = vmul.f32 %v54, 0.003921569
    %v115 = vmul.f32 %v55, 0.003921569
    %v116 = vmul.f32 %v56, 0.003921569
    %v117 = vmul.f32 %v57, 0.003921569
    %v118 = vmul.f32 %v58, 0.003921569
    %v119 = vmul.f32 %v59, 0.003921569
    %v120 = vmul.f32 %v60, 0.003921569
    %v121 = vmul.f32 %v61, 0.003921569
    %v122 = vmul.f32 %v62, 0.003921569
    %v123 = vmul.f32 %v63, 0.003921569
    %v124 = vmul.f32 %v64, 0.003921569
    %v125 = vmul.f32 %v65, 0.003921569
    %v126 = vmul.f32 %v66, 0.003921569
    %v127 = vmul.f32 %v67, 0.003921569
    %v128 = vmul.f32 %v68, 0.003921569
    %v129 = vmul.f32 %v69, 0.003921569
    %v130 = vmul.f32 %v70, 0.003921569
    %v131 = vmul.f32 %v71, 0.003921569
    %v132 = vmul.f32 %v72, 0.003921569
    %v133 = vmul.f32 %v73, 0.003921569
    %v134 = vmul.f32 %v74, 0.003921569
    %v135 = vmul.f32 %v75, 0.003921569
    %v136 = vmul.f32 %v76, 0.003921569
    %v137 = vmul.f32 %v77, 0.003921569
    %v138 = vmul.f32 %v78, 0.003921569
    %v139 = vmul.f32 %v79, 0.003921569
    %v140 = vmul.f32 %v80, 0.003921569
    %v141 = vmul.f32 %v81, 0.003921569
    %v142 = vmul.f32 %v82, 0.003921569
    %v143 = vmul.f32 %v83, 0.003921569
    %v144 = vmul.f32 %v84, 0.003921569
    %v145 = vmul.f32 %v85, 0.003921569
    %v146 = vmul.f32 %v86, 0.003921569
    %v147 = vmul.f32 %v87, 0.003921569
    %v148 = vmul.f32 %v88, 0.003921569
    %v149 = vmul.f32 %v89, 0.003921569
    %v150 = vld [vmem:[%s1] sm:$0xff]
    %v151 = vld [vmem:[%s1 + $0x8] sm:$0xff]
    %v152 = vld [vmem:[%s1 + $0x10] sm:$0xff]
    %v153 = vld [vmem:[%s1 + $0x18] sm:$0xff]
    %v154 = vld [vmem:[%s1 + $0x20] sm:$0xff]
    %vm155 = vcmask 326656
    %v157 = vsel %vm155, %v90, 0
    %v160 = vsel %vm155, %v91, 0
    %v163 = vsel %vm155, %v92, 0
    %v166 = vsel %vm155, %v93, 0
    %v169 = vsel %vm155, %v94, 0
    %v172 = vsel %vm155, %v95, 0
    %v175 = vsel %vm155, %v96, 0
    %v178 = vsel %vm155, %v97, 0
    %v181 = vsel %vm155, %v98, 0
    %v184 = vsel %vm155, %v99, 0
    %v187 = vsel %vm155, %v100, 0
    %v190 = vsel %vm155, %v101, 0
    %v193 = vsel %vm155, %v102, 0
    %v196 = vsel %vm155, %v103, 0
    %v199 = vsel %vm155, %v104, 0
    %v202 = vsel %vm155, %v105, 0
    %v205 = vsel %vm155, %v106, 0
    %v208 = vsel %vm155, %v107, 0
    %v211 = vsel %vm155, %v108, 0
    %v214 = vsel %vm155, %v109, 0
    %v217 = vsel %vm155, %v110, 0
    %v220 = vsel %vm155, %v111, 0
    %v223 = vsel %vm155, %v112, 0
    %v226 = vsel %vm155, %v113, 0
    %v229 = vsel %vm155, %v114, 0
    %v232 = vsel %vm155, %v115, 0
    %v235 = vsel %vm155, %v116, 0
    %v238 = vsel %vm155, %v117, 0
    %v241 = vsel %vm155, %v118, 0
    %v244 = vsel %vm155, %v119, 0
    %v247 = vsel %vm155, %v120, 0
    %v250 = vsel %vm155, %v121, 0
    %v253 = vsel %vm155, %v122, 0
    %v256 = vsel %vm155, %v123, 0
    %v259 = vsel %vm155, %v124, 0
    %v262 = vsel %vm155, %v125, 0
    %v265 = vsel %vm155, %v126, 0
    %v268 = vsel %vm155, %v127, 0
    %v271 = vsel %vm155, %v128, 0
    %v274 = vsel %vm155, %v129, 0
    %v277 = vsel %vm155, %v130, 0
    %v280 = vsel %vm155, %v131, 0
    %v283 = vsel %vm155, %v132, 0
    %v286 = vsel %vm155, %v133, 0
    %v289 = vsel %vm155, %v134, 0
    %v292 = vsel %vm155, %v135, 0
    %v295 = vsel %vm155, %v136, 0
    %v298 = vsel %vm155, %v137, 0
    %v301 = vsel %vm155, %v138, 0
    %v304 = vsel %vm155, %v139, 0
    %v307 = vsel %vm155, %v140, 0
    %v310 = vsel %vm155, %v141, 0
    %v313 = vsel %vm155, %v142, 0
    %v316 = vsel %vm155, %v143, 0
    %v319 = vsel %vm155, %v144, 0
    %v322 = vsel %vm155, %v145, 0
    %v325 = vsel %vm155, %v146, 0
    %v328 = vsel %vm155, %v147, 0
    %v331 = vsel %vm155, %v148, 0
    %v334 = vsel %vm155, %v149, 0
    %336 = vmatpush.msra.mxu0 0.0
    %337 = vmatpush.msra.mxu0 0.0
    %338 = vmatpush.msra.mxu0 0.0
    %339 = vmatpush.msra.mxu0 0.0
    %340 = vmatpush.msra.mxu0 0.0
    %341 = vmatpush.msra.mxu0 0.0
    %342 = vmatpush.msra.mxu0 0.0
    %343 = vmatpush.msra.mxu0 0.0
    %344 = vmatpush.msra.mxu0 0.0
    %345 = vmatpush.msra.mxu0 0.0
    %346 = vmatpush.msra.mxu0 0.0
    %347 = vmatpush.msra.mxu0 %v154
    %348 = vmatpush.msra.mxu0 %v153
    %349 = vmatpush.msra.mxu0 %v152
    %350 = vmatpush.msra.mxu0 %v151
    %351 = vmatpush.msra.mxu0 %v150
    %352 = vmatmul.f32.gmra.mxu0 %v157
    %v353 = vpop.f32.mrf.mxu0
    %v354 = vadd.f32 0.0, %v353
    %355 = vmatmul.f32.gmra.mxu0 %v160
    %v356 = vpop.f32.mrf.mxu0
    %v357 = vadd.f32 0.0, %v356
    %358 = vmatmul.f32.gmra.mxu0 %v163
    %v359 = vpop.f32.mrf.mxu0
    %v360 = vadd.f32 0.0, %v359
    %361 = vmatmul.f32.gmra.mxu0 %v166
    %v362 = vpop.f32.mrf.mxu0
    %v363 = vadd.f32 0.0, %v362
    %364 = vmatmul.f32.gmra.mxu0 %v169
    %v365 = vpop.f32.mrf.mxu0
    %v366 = vadd.f32 0.0, %v365
    %367 = vmatmul.f32.gmra.mxu0 %v172
    %v368 = vpop.f32.mrf.mxu0
    %v369 = vadd.f32 0.0, %v368
    %370 = vmatmul.f32.gmra.mxu0 %v175
    %v371 = vpop.f32.mrf.mxu0
    %v372 = vadd.f32 0.0, %v371
    %373 = vmatmul.f32.gmra.mxu0 %v178
    %v374 = vpop.f32.mrf.mxu0
    %v375 = vadd.f32 0.0, %v374
    %376 = vmatmul.f32.gmra.mxu0 %v181
    %v377 = vpop.f32.mrf.mxu0
    %v378 = vadd.f32 0.0, %v377
    %379 = vmatmul.f32.gmra.mxu0 %v184
    %v380 = vpop.f32.mrf.mxu0
    %v381 = vadd.f32 0.0, %v380
    %382 = vmatmul.f32.gmra.mxu0 %v187
    %v383 = vpop.f32.mrf.mxu0
    %v384 = vadd.f32 0.0, %v383
    %385 = vmatmul.f32.gmra.mxu0 %v190
    %v386 = vpop.f32.mrf.mxu0
    %v387 = vadd.f32 0.0, %v386
    %388 = vmatmul.f32.gmra.mxu0 %v193
    %v389 = vpop.f32.mrf.mxu0
    %v390 = vadd.f32 0.0, %v389
    %391 = vmatmul.f32.gmra.mxu0 %v196
    %v392 = vpop.f32.mrf.mxu0
    %v393 = vadd.f32 0.0, %v392
    %394 = vmatmul.f32.gmra.mxu0 %v199
    %v395 = vpop.f32.mrf.mxu0
    %v396 = vadd.f32 0.0, %v395
    %397 = vmatmul.f32.gmra.mxu0 %v202
    %v398 = vpop.f32.mrf.mxu0
    %v399 = vadd.f32 0.0, %v398
    %400 = vmatmul.f32.gmra.mxu0 %v205
    %v401 = vpop.f32.mrf.mxu0
    %v402 = vadd.f32 0.0, %v401
    %403 = vmatmul.f32.gmra.mxu0 %v208
    %v404 = vpop.f32.mrf.mxu0
    %v405 = vadd.f32 0.0, %v404
    %406 = vmatmul.f32.gmra.mxu0 %v211
    %v407 = vpop.f32.mrf.mxu0
    %v408 = vadd.f32 0.0, %v407
    %409 = vmatmul.f32.gmra.mxu0 %v214
    %v410 = vpop.f32.mrf.mxu0
    %v411 = vadd.f32 0.0, %v410
    %412 = vmatmul.f32.gmra.mxu0 %v217
    %v413 = vpop.f32.mrf.mxu0
    %v414 = vadd.f32 0.0, %v413
    %415 = vmatmul.f32.gmra.mxu0 %v220
    %v416 = vpop.f32.mrf.mxu0
    %v417 = vadd.f32 0.0, %v416
    %418 = vmatmul.f32.gmra.mxu0 %v223
    %v419 = vpop.f32.mrf.mxu0
    %v420 = vadd.f32 0.0, %v419
    %421 = vmatmul.f32.gmra.mxu0 %v226
    %v422 = vpop.f32.mrf.mxu0
    %v423 = vadd.f32 0.0, %v422
    %424 = vmatmul.f32.gmra.mxu0 %v229
    %v425 = vpop.f32.mrf.mxu0
    %v426 = vadd.f32 0.0, %v425
    %427 = vmatmul.f32.gmra.mxu0 %v232
    %v428 = vpop.f32.mrf.mxu0
    %v429 = vadd.f32 0.0, %v428
    %430 = vmatmul.f32.gmra.mxu0 %v235
    %v431 = vpop.f32.mrf.mxu0
    %v432 = vadd.f32 0.0, %v431
    %433 = vmatmul.f32.gmra.mxu0 %v238
    %v434 = vpop.f32.mrf.mxu0
    %v435 = vadd.f32 0.0, %v434
    %436 = vmatmul.f32.gmra.mxu0 %v241
    %v437 = vpop.f32.mrf.mxu0
    %v438 = vadd.f32 0.0, %v437
    %439 = vmatmul.f32.gmra.mxu0 %v244
    %v440 = vpop.f32.mrf.mxu0
    %v441 = vadd.f32 0.0, %v440
    %442 = vmatmul.f32.gmra.mxu0 %v247
    %v443 = vpop.f32.mrf.mxu0
    %v444 = vadd.f32 0.0, %v443
    %445 = vmatmul.f32.gmra.mxu0 %v250
    %v446 = vpop.f32.mrf.mxu0
    %v447 = vadd.f32 0.0, %v446
    %448 = vmatmul.f32.gmra.mxu0 %v253
    %v449 = vpop.f32.mrf.mxu0
    %v450 = vadd.f32 0.0, %v449
    %451 = vmatmul.f32.gmra.mxu0 %v256
    %v452 = vpop.f32.mrf.mxu0
    %v453 = vadd.f32 0.0, %v452
    %454 = vmatmul.f32.gmra.mxu0 %v259
    %v455 = vpop.f32.mrf.mxu0
    %v456 = vadd.f32 0.0, %v455
    %457 = vmatmul.f32.gmra.mxu0 %v262
    %v458 = vpop.f32.mrf.mxu0
    %v459 = vadd.f32 0.0, %v458
    %460 = vmatmul.f32.gmra.mxu0 %v265
    %v461 = vpop.f32.mrf.mxu0
    %v462 = vadd.f32 0.0, %v461
    %463 = vmatmul.f32.gmra.mxu0 %v268
    %v464 = vpop.f32.mrf.mxu0
    %v465 = vadd.f32 0.0, %v464
    %466 = vmatmul.f32.gmra.mxu0 %v271
    %v467 = vpop.f32.mrf.mxu0
    %v468 = vadd.f32 0.0, %v467
    %469 = vmatmul.f32.gmra.mxu0 %v274
    %v470 = vpop.f32.mrf.mxu0
    %v471 = vadd.f32 0.0, %v470
    %472 = vmatmul.f32.gmra.mxu0 %v277
    %v473 = vpop.f32.mrf.mxu0
    %v474 = vadd.f32 0.0, %v473
    %475 = vmatmul.f32.gmra.mxu0 %v280
    %v476 = vpop.f32.mrf.mxu0
    %v477 = vadd.f32 0.0, %v476
    %478 = vmatmul.f32.gmra.mxu0 %v283
    %v479 = vpop.f32.mrf.mxu0
    %v480 = vadd.f32 0.0, %v479
    %481 = vmatmul.f32.gmra.mxu0 %v286
    %v482 = vpop.f32.mrf.mxu0
    %v483 = vadd.f32 0.0, %v482
    %484 = vmatmul.f32.gmra.mxu0 %v289
    %v485 = vpop.f32.mrf.mxu0
    %v486 = vadd.f32 0.0, %v485
    %487 = vmatmul.f32.gmra.mxu0 %v292
    %v488 = vpop.f32.mrf.mxu0
    %v489 = vadd.f32 0.0, %v488
    %490 = vmatmul.f32.gmra.mxu0 %v295
    %v491 = vpop.f32.mrf.mxu0
    %v492 = vadd.f32 0.0, %v491
    %493 = vmatmul.f32.gmra.mxu0 %v298
    %v494 = vpop.f32.mrf.mxu0
    %v495 = vadd.f32 0.0, %v494
    %496 = vmatmul.f32.gmra.mxu0 %v301
    %v497 = vpop.f32.mrf.mxu0
    %v498 = vadd.f32 0.0, %v497
    %499 = vmatmul.f32.gmra.mxu0 %v304
    %v500 = vpop.f32.mrf.mxu0
    %v501 = vadd.f32 0.0, %v500
    %502 = vmatmul.f32.gmra.mxu0 %v307
    %v503 = vpop.f32.mrf.mxu0
    %v504 = vadd.f32 0.0, %v503
    %505 = vmatmul.f32.gmra.mxu0 %v310
    %v506 = vpop.f32.mrf.mxu0
    %v507 = vadd.f32 0.0, %v506
    %508 = vmatmul.f32.gmra.mxu0 %v313
    %v509 = vpop.f32.mrf.mxu0
    %v510 = vadd.f32 0.0, %v509
    %511 = vmatmul.f32.gmra.mxu0 %v316
    %v512 = vpop.f32.mrf.mxu0
    %v513 = vadd.f32 0.0, %v512
    %514 = vmatmul.f32.gmra.mxu0 %v319
    %v515 = vpop.f32.mrf.mxu0
    %v516 = vadd.f32 0.0, %v515
    %517 = vmatmul.f32.gmra.mxu0 %v322
    %v518 = vpop.f32.mrf.mxu0
    %v519 = vadd.f32 0.0, %v518
    %520 = vmatmul.f32.gmra.mxu0 %v325
    %v521 = vpop.f32.mrf.mxu0
    %v522 = vadd.f32 0.0, %v521
    %523 = vmatmul.f32.gmra.mxu0 %v328
    %v524 = vpop.f32.mrf.mxu0
    %v525 = vadd.f32 0.0, %v524
    %526 = vmatmul.f32.gmra.mxu0 %v331
    %v527 = vpop.f32.mrf.mxu0
    %v528 = vadd.f32 0.0, %v527
    %529 = vmatmul.f32.gmra.mxu0 %v334
    %v530 = vpop.f32.mrf.mxu0
    %v531 = vadd.f32 0.0, %v530
    %532 = vdwg.mxu0
    %v533 = vld [vmem:[%s2] sm:$0xff]
    %v534 = vld [vmem:[%s2 + $0x8] sm:$0xff]
    %v535 = vld [vmem:[%s2 + $0x10] sm:$0xff]
    %v536 = vld [vmem:[%s2 + $0x18] sm:$0xff]
    %v538 = vsel %vm155, %v533, 0
    %v541 = vsel %vm155, %v534, 0
    %v544 = vsel %vm155, %v535, 0
    %v547 = vsel %vm155, %v536, 0
    %549 = vmatpush.msra.mxu0 0.0
    %550 = vmatpush.msra.mxu0 0.0
    %551 = vmatpush.msra.mxu0 0.0
    %552 = vmatpush.msra.mxu0 0.0
    %553 = vmatpush.msra.mxu0 0.0
    %554 = vmatpush.msra.mxu0 0.0
    %555 = vmatpush.msra.mxu0 0.0
    %556 = vmatpush.msra.mxu0 0.0
    %557 = vmatpush.msra.mxu0 0.0
    %558 = vmatpush.msra.mxu0 0.0
    %559 = vmatpush.msra.mxu0 0.0
    %560 = vmatpush.msra.mxu0 %v366
    %561 = vmatpush.msra.mxu0 %v363
    %562 = vmatpush.msra.mxu0 %v360
    %563 = vmatpush.msra.mxu0 %v357
    %564 = vmatpush.msra.mxu0 %v354
    %565 = vmatmul.f32.gmra.mxu0 %v538
    %v566 = vpop.f32.mrf.mxu0
    %v567 = vadd.f32 0.0, %v566
    %568 = vmatmul.f32.gmra.mxu0 %v541
    %v569 = vpop.f32.mrf.mxu0
    %v570 = vadd.f32 0.0, %v569
    %571 = vmatmul.f32.gmra.mxu0 %v544
    %v572 = vpop.f32.mrf.mxu0
    %v573 = vadd.f32 0.0, %v572
    %574 = vmatmul.f32.gmra.mxu0 %v547
    %v575 = vpop.f32.mrf.mxu0
    %v576 = vadd.f32 0.0, %v575
    %577 = vdwg.mxu0
    %v578 = vmul.f32 %v567, 2.0
    %v579 = vmul.f32 %v570, 2.0
    %v580 = vmul.f32 %v573, 2.0
    %v581 = vmul.f32 %v576, 2.0
    %v582 = vsub.f32 %v578, 1.0
    %v583 = vsub.f32 %v579, 1.0
    %v584 = vsub.f32 %v580, 1.0
    %v585 = vsub.f32 %v581, 1.0
    %vm586 = vcmask 261120
    %587 = vst.msk [vmem:[%s3] sm:$0xff] %vm586, %v582
    %588 = vst.msk [vmem:[%s3 + $0x8] sm:$0xff] %vm586, %v583
    %589 = vst.msk [vmem:[%s3 + $0x10] sm:$0xff] %vm586, %v584
    %590 = vst.msk [vmem:[%s3 + $0x18] sm:$0xff] %vm586, %v585
    %591 = vmatpush.msra.mxu0 0.0
    %592 = vmatpush.msra.mxu0 0.0
    %593 = vmatpush.msra.mxu0 0.0
    %594 = vmatpush.msra.mxu0 0.0
    %595 = vmatpush.msra.mxu0 0.0
    %596 = vmatpush.msra.mxu0 0.0
    %597 = vmatpush.msra.mxu0 0.0
    %598 = vmatpush.msra.mxu0 0.0
    %599 = vmatpush.msra.mxu0 0.0
    %600 = vmatpush.msra.mxu0 0.0
    %601 = vmatpush.msra.mxu0 0.0
    %602 = vmatpush.msra.mxu0 %v381
    %603 = vmatpush.msra.mxu0 %v378
    %604 = vmatpush.msra.mxu0 %v375
    %605 = vmatpush.msra.mxu0 %v372
    %606 = vmatpush.msra.mxu0 %v369
    %607 = vmatmul.f32.gmra.mxu0 %v538
    %v608 = vpop.f32.mrf.mxu0
    %v609 = vadd.f32 0.0, %v608
    %610 = vmatmul.f32.gmra.mxu0 %v541
    %v611 = vpop.f32.mrf.mxu0
    %v612 = vadd.f32 0.0, %v611
    %613 = vmatmul.f32.gmra.mxu0 %v544
    %v614 = vpop.f32.mrf.mxu0
    %v615 = vadd.f32 0.0, %v614
    %616 = vmatmul.f32.gmra.mxu0 %v547
    %v617 = vpop.f32.mrf.mxu0
    %v618 = vadd.f32 0.0, %v617
    %619 = vdwg.mxu0
    %v620 = vmul.f32 %v609, 2.0
    %v621 = vmul.f32 %v612, 2.0
    %v622 = vmul.f32 %v615, 2.0
    %v623 = vmul.f32 %v618, 2.0
    %v624 = vsub.f32 %v620, 1.0
    %v625 = vsub.f32 %v621, 1.0
    %v626 = vsub.f32 %v622, 1.0
    %v627 = vsub.f32 %v623, 1.0
    %s628 = scalar_lea.vmem %s3, 32
    %629 = vst.msk [vmem:[%s628] sm:$0xff] %vm586, %v624
    %630 = vst.msk [vmem:[%s628 + $0x8] sm:$0xff] %vm586, %v625
    %631 = vst.msk [vmem:[%s628 + $0x10] sm:$0xff] %vm586, %v626
    %632 = vst.msk [vmem:[%s628 + $0x18] sm:$0xff] %vm586, %v627
    %633 = vmatpush.msra.mxu0 0.0
    %634 = vmatpush.msra.mxu0 0.0
    %635 = vmatpush.msra.mxu0 0.0
    %636 = vmatpush.msra.mxu0 0.0
    %637 = vmatpush.msra.mxu0 0.0
    %638 = vmatpush.msra.mxu0 0.0
    %639 = vmatpush.msra.mxu0 0.0
    %640 = vmatpush.msra.mxu0 0.0
    %641 = vmatpush.msra.mxu0 0.0
    %642 = vmatpush.msra.mxu0 0.0
    %643 = vmatpush.msra.mxu0 0.0
    %644 = vmatpush.msra.mxu0 %v396
    %645 = vmatpush.msra.mxu0 %v393
    %646 = vmatpush.msra.mxu0 %v390
    %647 = vmatpush.msra.mxu0 %v387
    %648 = vmatpush.msra.mxu0 %v384
    %649 = vmatmul.f32.gmra.mxu0 %v538
    %v650 = vpop.f32.mrf.mxu0
    %v651 = vadd.f32 0.0, %v650
    %652 = vmatmul.f32.gmra.mxu0 %v541
    %v653 = vpop.f32.mrf.mxu0
    %v654 = vadd.f32 0.0, %v653
    %655 = vmatmul.f32.gmra.mxu0 %v544
    %v656 = vpop.f32.mrf.mxu0
    %v657 = vadd.f32 0.0, %v656
    %658 = vmatmul.f32.gmra.mxu0 %v547
    %v659 = vpop.f32.mrf.mxu0
    %v660 = vadd.f32 0.0, %v659
    %661 = vdwg.mxu0
    %v662 = vmul.f32 %v651, 2.0
    %v663 = vmul.f32 %v654, 2.0
    %v664 = vmul.f32 %v657, 2.0
    %v665 = vmul.f32 %v660, 2.0
    %v666 = vsub.f32 %v662, 1.0
    %v667 = vsub.f32 %v663, 1.0
    %v668 = vsub.f32 %v664, 1.0
    %v669 = vsub.f32 %v665, 1.0
    %s670 = scalar_lea.vmem %s3, 64
    %671 = vst.msk [vmem:[%s670] sm:$0xff] %vm586, %v666
    %672 = vst.msk [vmem:[%s670 + $0x8] sm:$0xff] %vm586, %v667
    %673 = vst.msk [vmem:[%s670 + $0x10] sm:$0xff] %vm586, %v668
    %674 = vst.msk [vmem:[%s670 + $0x18] sm:$0xff] %vm586, %v669
    %675 = vmatpush.msra.mxu0 0.0
    %676 = vmatpush.msra.mxu0 0.0
    %677 = vmatpush.msra.mxu0 0.0
    %678 = vmatpush.msra.mxu0 0.0
    %679 = vmatpush.msra.mxu0 0.0
    %680 = vmatpush.msra.mxu0 0.0
    %681 = vmatpush.msra.mxu0 0.0
    %682 = vmatpush.msra.mxu0 0.0
    %683 = vmatpush.msra.mxu0 0.0
    %684 = vmatpush.msra.mxu0 0.0
    %685 = vmatpush.msra.mxu0 0.0
    %686 = vmatpush.msra.mxu0 %v411
    %687 = vmatpush.msra.mxu0 %v408
    %688 = vmatpush.msra.mxu0 %v405
    %689 = vmatpush.msra.mxu0 %v402
    %690 = vmatpush.msra.mxu0 %v399
    %691 = vmatmul.f32.gmra.mxu0 %v538
    %v692 = vpop.f32.mrf.mxu0
    %v693 = vadd.f32 0.0, %v692
    %694 = vmatmul.f32.gmra.mxu0 %v541
    %v695 = vpop.f32.mrf.mxu0
    %v696 = vadd.f32 0.0, %v695
    %697 = vmatmul.f32.gmra.mxu0 %v544
    %v698 = vpop.f32.mrf.mxu0
    %v699 = vadd.f32 0.0, %v698
    %700 = vmatmul.f32.gmra.mxu0 %v547
    %v701 = vpop.f32.mrf.mxu0
    %v702 = vadd.f32 0.0, %v701
    %703 = vdwg.mxu0
    %v704 = vmul.f32 %v693, 2.0
    %v705 = vmul.f32 %v696, 2.0
    %v706 = vmul.f32 %v699, 2.0
    %v707 = vmul.f32 %v702, 2.0
    %v708 = vsub.f32 %v704, 1.0
    %v709 = vsub.f32 %v705, 1.0
    %v710 = vsub.f32 %v706, 1.0
    %v711 = vsub.f32 %v707, 1.0
    %s712 = scalar_lea.vmem %s3, 96
    %713 = vst.msk [vmem:[%s712] sm:$0xff] %vm586, %v708
    %714 = vst.msk [vmem:[%s712 + $0x8] sm:$0xff] %vm586, %v709
    %715 = vst.msk [vmem:[%s712 + $0x10] sm:$0xff] %vm586, %v710
    %716 = vst.msk [vmem:[%s712 + $0x18] sm:$0xff] %vm586, %v711
    %717 = vmatpush.msra.mxu0 0.0
    %718 = vmatpush.msra.mxu0 0.0
    %719 = vmatpush.msra.mxu0 0.0
    %720 = vmatpush.msra.mxu0 0.0
    %721 = vmatpush.msra.mxu0 0.0
    %722 = vmatpush.msra.mxu0 0.0
    %723 = vmatpush.msra.mxu0 0.0
    %724 = vmatpush.msra.mxu0 0.0
    %725 = vmatpush.msra.mxu0 0.0
    %726 = vmatpush.msra.mxu0 0.0
    %727 = vmatpush.msra.mxu0 0.0
    %728 = vmatpush.msra.mxu0 %v426
    %729 = vmatpush.msra.mxu0 %v423
    %730 = vmatpush.msra.mxu0 %v420
    %731 = vmatpush.msra.mxu0 %v417
    %732 = vmatpush.msra.mxu0 %v414
    %733 = vmatmul.f32.gmra.mxu0 %v538
    %v734 = vpop.f32.mrf.mxu0
    %v735 = vadd.f32 0.0, %v734
    %736 = vmatmul.f32.gmra.mxu0 %v541
    %v737 = vpop.f32.mrf.mxu0
    %v738 = vadd.f32 0.0, %v737
    %739 = vmatmul.f32.gmra.mxu0 %v544
    %v740 = vpop.f32.mrf.mxu0
    %v741 = vadd.f32 0.0, %v740
    %742 = vmatmul.f32.gmra.mxu0 %v547
    %v743 = vpop.f32.mrf.mxu0
    %v744 = vadd.f32 0.0, %v743
    %745 = vdwg.mxu0
    %v746 = vmul.f32 %v735, 2.0
    %v747 = vmul.f32 %v738, 2.0
    %v748 = vmul.f32 %v741, 2.0
    %v749 = vmul.f32 %v744, 2.0
    %v750 = vsub.f32 %v746, 1.0
    %v751 = vsub.f32 %v747, 1.0
    %v752 = vsub.f32 %v748, 1.0
    %v753 = vsub.f32 %v749, 1.0
    %s754 = scalar_lea.vmem %s3, 128
    %755 = vst.msk [vmem:[%s754] sm:$0xff] %vm586, %v750
    %756 = vst.msk [vmem:[%s754 + $0x8] sm:$0xff] %vm586, %v751
    %757 = vst.msk [vmem:[%s754 + $0x10] sm:$0xff] %vm586, %v752
    %758 = vst.msk [vmem:[%s754 + $0x18] sm:$0xff] %vm586, %v753
    %759 = vmatpush.msra.mxu0 0.0
    %760 = vmatpush.msra.mxu0 0.0
    %761 = vmatpush.msra.mxu0 0.0
    %762 = vmatpush.msra.mxu0 0.0
    %763 = vmatpush.msra.mxu0 0.0
    %764 = vmatpush.msra.mxu0 0.0
    %765 = vmatpush.msra.mxu0 0.0
    %766 = vmatpush.msra.mxu0 0.0
    %767 = vmatpush.msra.mxu0 0.0
    %768 = vmatpush.msra.mxu0 0.0
    %769 = vmatpush.msra.mxu0 0.0
    %770 = vmatpush.msra.mxu0 %v441
    %771 = vmatpush.msra.mxu0 %v438
    %772 = vmatpush.msra.mxu0 %v435
    %773 = vmatpush.msra.mxu0 %v432
    %774 = vmatpush.msra.mxu0 %v429
    %775 = vmatmul.f32.gmra.mxu0 %v538
    %v776 = vpop.f32.mrf.mxu0
    %v777 = vadd.f32 0.0, %v776
    %778 = vmatmul.f32.gmra.mxu0 %v541
    %v779 = vpop.f32.mrf.mxu0
    %v780 = vadd.f32 0.0, %v779
    %781 = vmatmul.f32.gmra.mxu0 %v544
    %v782 = vpop.f32.mrf.mxu0
    %v783 = vadd.f32 0.0, %v782
    %784 = vmatmul.f32.gmra.mxu0 %v547
    %v785 = vpop.f32.mrf.mxu0
    %v786 = vadd.f32 0.0, %v785
    %787 = vdwg.mxu0
    %v788 = vmul.f32 %v777, 2.0
    %v789 = vmul.f32 %v780, 2.0
    %v790 = vmul.f32 %v783, 2.0
    %v791 = vmul.f32 %v786, 2.0
    %v792 = vsub.f32 %v788, 1.0
    %v793 = vsub.f32 %v789, 1.0
    %v794 = vsub.f32 %v790, 1.0
    %v795 = vsub.f32 %v791, 1.0
    %s796 = scalar_lea.vmem %s3, 160
    %797 = vst.msk [vmem:[%s796] sm:$0xff] %vm586, %v792
    %798 = vst.msk [vmem:[%s796 + $0x8] sm:$0xff] %vm586, %v793
    %799 = vst.msk [vmem:[%s796 + $0x10] sm:$0xff] %vm586, %v794
    %800 = vst.msk [vmem:[%s796 + $0x18] sm:$0xff] %vm586, %v795
    %801 = vmatpush.msra.mxu0 0.0
    %802 = vmatpush.msra.mxu0 0.0
    %803 = vmatpush.msra.mxu0 0.0
    %804 = vmatpush.msra.mxu0 0.0
    %805 = vmatpush.msra.mxu0 0.0
    %806 = vmatpush.msra.mxu0 0.0
    %807 = vmatpush.msra.mxu0 0.0
    %808 = vmatpush.msra.mxu0 0.0
    %809 = vmatpush.msra.mxu0 0.0
    %810 = vmatpush.msra.mxu0 0.0
    %811 = vmatpush.msra.mxu0 0.0
    %812 = vmatpush.msra.mxu0 %v456
    %813 = vmatpush.msra.mxu0 %v453
    %814 = vmatpush.msra.mxu0 %v450
    %815 = vmatpush.msra.mxu0 %v447
    %816 = vmatpush.msra.mxu0 %v444
    %817 = vmatmul.f32.gmra.mxu0 %v538
    %v818 = vpop.f32.mrf.mxu0
    %v819 = vadd.f32 0.0, %v818
    %820 = vmatmul.f32.gmra.mxu0 %v541
    %v821 = vpop.f32.mrf.mxu0
    %v822 = vadd.f32 0.0, %v821
    %823 = vmatmul.f32.gmra.mxu0 %v544
    %v824 = vpop.f32.mrf.mxu0
    %v825 = vadd.f32 0.0, %v824
    %826 = vmatmul.f32.gmra.mxu0 %v547
    %v827 = vpop.f32.mrf.mxu0
    %v828 = vadd.f32 0.0, %v827
    %829 = vdwg.mxu0
    %v830 = vmul.f32 %v819, 2.0
    %v831 = vmul.f32 %v822, 2.0
    %v832 = vmul.f32 %v825, 2.0
    %v833 = vmul.f32 %v828, 2.0
    %v834 = vsub.f32 %v830, 1.0
    %v835 = vsub.f32 %v831, 1.0
    %v836 = vsub.f32 %v832, 1.0
    %v837 = vsub.f32 %v833, 1.0
    %s838 = scalar_lea.vmem %s3, 192
    %839 = vst.msk [vmem:[%s838] sm:$0xff] %vm586, %v834
    %840 = vst.msk [vmem:[%s838 + $0x8] sm:$0xff] %vm586, %v835
    %841 = vst.msk [vmem:[%s838 + $0x10] sm:$0xff] %vm586, %v836
    %842 = vst.msk [vmem:[%s838 + $0x18] sm:$0xff] %vm586, %v837
    %843 = vmatpush.msra.mxu0 0.0
    %844 = vmatpush.msra.mxu0 0.0
    %845 = vmatpush.msra.mxu0 0.0
    %846 = vmatpush.msra.mxu0 0.0
    %847 = vmatpush.msra.mxu0 0.0
    %848 = vmatpush.msra.mxu0 0.0
    %849 = vmatpush.msra.mxu0 0.0
    %850 = vmatpush.msra.mxu0 0.0
    %851 = vmatpush.msra.mxu0 0.0
    %852 = vmatpush.msra.mxu0 0.0
    %853 = vmatpush.msra.mxu0 0.0
    %854 = vmatpush.msra.mxu0 %v471
    %855 = vmatpush.msra.mxu0 %v468
    %856 = vmatpush.msra.mxu0 %v465
    %857 = vmatpush.msra.mxu0 %v462
    %858 = vmatpush.msra.mxu0 %v459
    %859 = vmatmul.f32.gmra.mxu0 %v538
    %v860 = vpop.f32.mrf.mxu0
    %v861 = vadd.f32 0.0, %v860
    %862 = vmatmul.f32.gmra.mxu0 %v541
    %v863 = vpop.f32.mrf.mxu0
    %v864 = vadd.f32 0.0, %v863
    %865 = vmatmul.f32.gmra.mxu0 %v544
    %v866 = vpop.f32.mrf.mxu0
    %v867 = vadd.f32 0.0, %v866
    %868 = vmatmul.f32.gmra.mxu0 %v547
    %v869 = vpop.f32.mrf.mxu0
    %v870 = vadd.f32 0.0, %v869
    %871 = vdwg.mxu0
    %v872 = vmul.f32 %v861, 2.0
    %v873 = vmul.f32 %v864, 2.0
    %v874 = vmul.f32 %v867, 2.0
    %v875 = vmul.f32 %v870, 2.0
    %v876 = vsub.f32 %v872, 1.0
    %v877 = vsub.f32 %v873, 1.0
    %v878 = vsub.f32 %v874, 1.0
    %v879 = vsub.f32 %v875, 1.0
    %s880 = scalar_lea.vmem %s3, 224
    %881 = vst.msk [vmem:[%s880] sm:$0xff] %vm586, %v876
    %882 = vst.msk [vmem:[%s880 + $0x8] sm:$0xff] %vm586, %v877
    %883 = vst.msk [vmem:[%s880 + $0x10] sm:$0xff] %vm586, %v878
    %884 = vst.msk [vmem:[%s880 + $0x18] sm:$0xff] %vm586, %v879
    %885 = vmatpush.msra.mxu0 0.0
    %886 = vmatpush.msra.mxu0 0.0
    %887 = vmatpush.msra.mxu0 0.0
    %888 = vmatpush.msra.mxu0 0.0
    %889 = vmatpush.msra.mxu0 0.0
    %890 = vmatpush.msra.mxu0 0.0
    %891 = vmatpush.msra.mxu0 0.0
    %892 = vmatpush.msra.mxu0 0.0
    %893 = vmatpush.msra.mxu0 0.0
    %894 = vmatpush.msra.mxu0 0.0
    %895 = vmatpush.msra.mxu0 0.0
    %896 = vmatpush.msra.mxu0 %v486
    %897 = vmatpush.msra.mxu0 %v483
    %898 = vmatpush.msra.mxu0 %v480
    %899 = vmatpush.msra.mxu0 %v477
    %900 = vmatpush.msra.mxu0 %v474
    %901 = vmatmul.f32.gmra.mxu0 %v538
    %v902 = vpop.f32.mrf.mxu0
    %v903 = vadd.f32 0.0, %v902
    %904 = vmatmul.f32.gmra.mxu0 %v541
    %v905 = vpop.f32.mrf.mxu0
    %v906 = vadd.f32 0.0, %v905
    %907 = vmatmul.f32.gmra.mxu0 %v544
    %v908 = vpop.f32.mrf.mxu0
    %v909 = vadd.f32 0.0, %v908
    %910 = vmatmul.f32.gmra.mxu0 %v547
    %v911 = vpop.f32.mrf.mxu0
    %v912 = vadd.f32 0.0, %v911
    %913 = vdwg.mxu0
    %v914 = vmul.f32 %v903, 2.0
    %v915 = vmul.f32 %v906, 2.0
    %v916 = vmul.f32 %v909, 2.0
    %v917 = vmul.f32 %v912, 2.0
    %v918 = vsub.f32 %v914, 1.0
    %v919 = vsub.f32 %v915, 1.0
    %v920 = vsub.f32 %v916, 1.0
    %v921 = vsub.f32 %v917, 1.0
    %s922 = scalar_lea.vmem %s3, 256
    %923 = vst.msk [vmem:[%s922] sm:$0xff] %vm586, %v918
    %924 = vst.msk [vmem:[%s922 + $0x8] sm:$0xff] %vm586, %v919
    %925 = vst.msk [vmem:[%s922 + $0x10] sm:$0xff] %vm586, %v920
    %926 = vst.msk [vmem:[%s922 + $0x18] sm:$0xff] %vm586, %v921
    %927 = vmatpush.msra.mxu0 0.0
    %928 = vmatpush.msra.mxu0 0.0
    %929 = vmatpush.msra.mxu0 0.0
    %930 = vmatpush.msra.mxu0 0.0
    %931 = vmatpush.msra.mxu0 0.0
    %932 = vmatpush.msra.mxu0 0.0
    %933 = vmatpush.msra.mxu0 0.0
    %934 = vmatpush.msra.mxu0 0.0
    %935 = vmatpush.msra.mxu0 0.0
    %936 = vmatpush.msra.mxu0 0.0
    %937 = vmatpush.msra.mxu0 0.0
    %938 = vmatpush.msra.mxu0 %v501
    %939 = vmatpush.msra.mxu0 %v498
    %940 = vmatpush.msra.mxu0 %v495
    %941 = vmatpush.msra.mxu0 %v492
    %942 = vmatpush.msra.mxu0 %v489
    %943 = vmatmul.f32.gmra.mxu0 %v538
    %v944 = vpop.f32.mrf.mxu0
    %v945 = vadd.f32 0.0, %v944
    %946 = vmatmul.f32.gmra.mxu0 %v541
    %v947 = vpop.f32.mrf.mxu0
    %v948 = vadd.f32 0.0, %v947
    %949 = vmatmul.f32.gmra.mxu0 %v544
    %v950 = vpop.f32.mrf.mxu0
    %v951 = vadd.f32 0.0, %v950
    %952 = vmatmul.f32.gmra.mxu0 %v547
    %v953 = vpop.f32.mrf.mxu0
    %v954 = vadd.f32 0.0, %v953
    %955 = vdwg.mxu0
    %v956 = vmul.f32 %v945, 2.0
    %v957 = vmul.f32 %v948, 2.0
    %v958 = vmul.f32 %v951, 2.0
    %v959 = vmul.f32 %v954, 2.0
    %v960 = vsub.f32 %v956, 1.0
    %v961 = vsub.f32 %v957, 1.0
    %v962 = vsub.f32 %v958, 1.0
    %v963 = vsub.f32 %v959, 1.0
    %s964 = scalar_lea.vmem %s3, 288
    %965 = vst.msk [vmem:[%s964] sm:$0xff] %vm586, %v960
    %966 = vst.msk [vmem:[%s964 + $0x8] sm:$0xff] %vm586, %v961
    %967 = vst.msk [vmem:[%s964 + $0x10] sm:$0xff] %vm586, %v962
    %968 = vst.msk [vmem:[%s964 + $0x18] sm:$0xff] %vm586, %v963
    %969 = vmatpush.msra.mxu0 0.0
    %970 = vmatpush.msra.mxu0 0.0
    %971 = vmatpush.msra.mxu0 0.0
    %972 = vmatpush.msra.mxu0 0.0
    %973 = vmatpush.msra.mxu0 0.0
    %974 = vmatpush.msra.mxu0 0.0
    %975 = vmatpush.msra.mxu0 0.0
    %976 = vmatpush.msra.mxu0 0.0
    %977 = vmatpush.msra.mxu0 0.0
    %978 = vmatpush.msra.mxu0 0.0
    %979 = vmatpush.msra.mxu0 0.0
    %980 = vmatpush.msra.mxu0 %v516
    %981 = vmatpush.msra.mxu0 %v513
    %982 = vmatpush.msra.mxu0 %v510
    %983 = vmatpush.msra.mxu0 %v507
    %984 = vmatpush.msra.mxu0 %v504
    %985 = vmatmul.f32.gmra.mxu0 %v538
    %v986 = vpop.f32.mrf.mxu0
    %v987 = vadd.f32 0.0, %v986
    %988 = vmatmul.f32.gmra.mxu0 %v541
    %v989 = vpop.f32.mrf.mxu0
    %v990 = vadd.f32 0.0, %v989
    %991 = vmatmul.f32.gmra.mxu0 %v544
    %v992 = vpop.f32.mrf.mxu0
    %v993 = vadd.f32 0.0, %v992
    %994 = vmatmul.f32.gmra.mxu0 %v547
    %v995 = vpop.f32.mrf.mxu0
    %v996 = vadd.f32 0.0, %v995
    %997 = vdwg.mxu0
    %v998 = vmul.f32 %v987, 2.0
    %v999 = vmul.f32 %v990, 2.0
    %v1000 = vmul.f32 %v993, 2.0
    %v1001 = vmul.f32 %v996, 2.0
    %v1002 = vsub.f32 %v998, 1.0
    %v1003 = vsub.f32 %v999, 1.0
    %v1004 = vsub.f32 %v1000, 1.0
    %v1005 = vsub.f32 %v1001, 1.0
    %s1006 = scalar_lea.vmem %s3, 320
    %1007 = vst.msk [vmem:[%s1006] sm:$0xff] %vm586, %v1002
    %1008 = vst.msk [vmem:[%s1006 + $0x8] sm:$0xff] %vm586, %v1003
    %1009 = vst.msk [vmem:[%s1006 + $0x10] sm:$0xff] %vm586, %v1004
    %1010 = vst.msk [vmem:[%s1006 + $0x18] sm:$0xff] %vm586, %v1005
    %1011 = vmatpush.msra.mxu0 0.0
    %1012 = vmatpush.msra.mxu0 0.0
    %1013 = vmatpush.msra.mxu0 0.0
    %1014 = vmatpush.msra.mxu0 0.0
    %1015 = vmatpush.msra.mxu0 0.0
    %1016 = vmatpush.msra.mxu0 0.0
    %1017 = vmatpush.msra.mxu0 0.0
    %1018 = vmatpush.msra.mxu0 0.0
    %1019 = vmatpush.msra.mxu0 0.0
    %1020 = vmatpush.msra.mxu0 0.0
    %1021 = vmatpush.msra.mxu0 0.0
    %1022 = vmatpush.msra.mxu0 %v531
    %1023 = vmatpush.msra.mxu0 %v528
    %1024 = vmatpush.msra.mxu0 %v525
    %1025 = vmatpush.msra.mxu0 %v522
    %1026 = vmatpush.msra.mxu0 %v519
    %1027 = vmatmul.f32.gmra.mxu0 %v538
    %v1028 = vpop.f32.mrf.mxu0
    %v1029 = vadd.f32 0.0, %v1028
    %1030 = vmatmul.f32.gmra.mxu0 %v541
    %v1031 = vpop.f32.mrf.mxu0
    %v1032 = vadd.f32 0.0, %v1031
    %1033 = vmatmul.f32.gmra.mxu0 %v544
    %v1034 = vpop.f32.mrf.mxu0
    %v1035 = vadd.f32 0.0, %v1034
    %1036 = vmatmul.f32.gmra.mxu0 %v547
    %v1037 = vpop.f32.mrf.mxu0
    %v1038 = vadd.f32 0.0, %v1037
    %1039 = vdwg.mxu0
    %v1040 = vmul.f32 %v1029, 2.0
    %v1041 = vmul.f32 %v1032, 2.0
    %v1042 = vmul.f32 %v1035, 2.0
    %v1043 = vmul.f32 %v1038, 2.0
    %v1044 = vsub.f32 %v1040, 1.0
    %v1045 = vsub.f32 %v1041, 1.0
    %v1046 = vsub.f32 %v1042, 1.0
    %v1047 = vsub.f32 %v1043, 1.0
    %s1048 = scalar_lea.vmem %s3, 352
    %1049 = vst.msk [vmem:[%s1048] sm:$0xff] %vm586, %v1044
    %1050 = vst.msk [vmem:[%s1048 + $0x8] sm:$0xff] %vm586, %v1045
    %1051 = vst.msk [vmem:[%s1048 + $0x10] sm:$0xff] %vm586, %v1046
    %1052 = vst.msk [vmem:[%s1048 + $0x18] sm:$0xff] %vm586, %v1047
    // Predicated region
    $region18: #{forward.2} parent=1 // pred_check
      _
    $region19: #{forward.2} parent=1 // pred_check_branch
      %1054 = sbr.rel (0) target = $region21
    $region20: #{forward.2} parent=1 // pred_region
      _
    $region21: #{forward.2} parent=1 // pred_fallthru
      _
    // Predicated region
    $region22: #{forward.2} parent=1 // pred_check
      _
    $region23: #{forward.2} parent=1 // pred_check_branch
      %1056 = sbr.rel (0) target = $region25
    $region24: #{forward.2} parent=1 // pred_region
      _
    $region25: #{forward.2} parent=1 // pred_fallthru
      _
    %1057 = vsyncpa [#allocation3], 1

// kernel: forward.3
$region0: #{forward.3}
  #allocation0 [shape = 'u32[]', space=smem, size = 0x4, offset = 0x4, fixed_abs, tag = 'smem constant byte address 0x4 - core index']
  #allocation1 [shape = 'u32[72,128]{1,0:T(1,128)}', space=vmem, size = 0x9000, scoped, tag = 'internal scratch']
  %s0 = inlined_call_operand.vmem [shape: f32[2], index: 0, kind: input, shape index: {}]
  %s1 = inlined_call_operand.vmem [shape: f32[64,192], index: 1, kind: input, shape index: {}]
  %s2 = inlined_call_operand.vmem [shape: f32[192,4], index: 2, kind: input, shape index: {}]
  %s3 = inlined_call_operand.vmem [shape: f32[1,4], index: 3, kind: input, shape index: {}]
  %s4 = inlined_call_operand.vmem [shape: f32[192,4], index: 4, kind: input, shape index: {}]
  %s5 = inlined_call_operand.vmem [shape: f32[1,4], index: 5, kind: input, shape index: {}]
  %s6 = inlined_call_operand.vmem [shape: f32[4,64,4], index: 6, kind: input, shape index: {}]
  %s7 = inlined_call_operand.vmem [shape: f32[4,64,4], index: 7, kind: input, shape index: {}]
  %s8 = inlined_call_operand.vmem [shape: f32[4,128], index: 8, kind: input, shape index: {}]
  %s9 = inlined_call_operand.vmem [shape: f32[1,128], index: 9, kind: input, shape index: {}]
  %s10 = inlined_call_operand.vmem [shape: bf16[128,128], index: 10, kind: input, shape index: {}]
  %s11 = inlined_call_operand.vmem [shape: f32[16,64], index: 11, kind: input, shape index: {}]
  %s12 = inlined_call_operand.hbm [shape: f32[64,128], index: 12, kind: output, shape index: {0}]
  %s13 = inlined_call_operand.hbm [shape: f32[16,128], index: 13, kind: output, shape index: {1}]
  %14 = xla_tuple %s12, %s13
  %s15 = sld [smem:[#allocation0]]
  $region70: #{forward.3} parent=0
    _
  %s17 = ssub.s32 1, %s15
  %s18 = scalar_select 0, %s17, %s15
  $region1: #{forward.3} parent=0
    #allocation2 [shape = 'u8[512]{0}', space=smem, size = 0x200, scoped, tag = 'input window, operand 0, single buffered']
    #allocation3 [shape = 's32[1]{0}', space=sflag, size = 0x4, scoped, tag = 'scoped memory for forward.3']
    #allocation4 [shape = 's32[1]{0}', space=sflag, size = 0x4, scoped, tag = 'scoped memory for forward.3']
    #allocation5 [shape = 'u8[32768]{0}', space=vmem, size = 0x8000, scoped, tag = 'output window, operand 0, single buffered']
    #allocation6 [shape = 'u8[8192]{0}', space=vmem, size = 0x2000, scoped, tag = 'output window, operand 1, single buffered']
    #allocation7 [shape = 's32[1]{0}', space=sflag, size = 0x4, scoped, tag = 'scoped memory for forward.3']
    %19 = vsyncpa [#allocation4], 0
    %20 = vsyncpa [#allocation3], 0
    %21 = vsyncpa [#allocation7], 0
    // Predicated region
    $region2: #{forward.3} parent=1 // pred_check
      _
    $region3: #{forward.3} parent=1 // pred_check_branch
      %23 = sbr.rel (0) target = $region5
    $region4: #{forward.3} parent=1 // pred_region
      %25 = vsyncadd [#allocation4], 0
      %s27 = sshll.u32 %s0, 4
      %s28 = int_to_ptr.vmem [resolvable:$true] %s27
      %30 = dma.vmem_to_smem %s28, 16, [#allocation2], [#allocation4]
    $region5: #{forward.3} parent=1 // pred_fallthru
      _
    // Predicated region
    $region6: #{forward.3} parent=1 // pred_check
      _
    $region7: #{forward.3} parent=1 // pred_check_branch
      %32 = sbr.rel (0) target = $region9
    $region8: #{forward.3} parent=1 // pred_region
      _
    $region9: #{forward.3} parent=1 // pred_fallthru
      _
    // Predicated region
    $region10: #{forward.3} parent=1 // pred_check
      _
    $region11: #{forward.3} parent=1 // pred_check_branch
      %34 = sbr.rel (0) target = $region13
    $region12: #{forward.3} parent=1 // pred_region
      _
    $region13: #{forward.3} parent=1 // pred_fallthru
      _
    // Predicated region
    $region14: #{forward.3} parent=1 // pred_check
      _
    $region15: #{forward.3} parent=1 // pred_check_branch
      %36 = sbr.rel (0) target = $region17
    $region16: #{forward.3} parent=1 // pred_region
      _
    $region17: #{forward.3} parent=1 // pred_fallthru
      _
    // Predicated region
    $region18: #{forward.3} parent=1 // pred_check
      _
    $region19: #{forward.3} parent=1 // pred_check_branch
      %38 = sbr.rel (0) target = $region21
    $region20: #{forward.3} parent=1 // pred_region
      _
    $region21: #{forward.3} parent=1 // pred_fallthru
      _
    // Predicated region
    $region22: #{forward.3} parent=1 // pred_check
      _
    $region23: #{forward.3} parent=1 // pred_check_branch
      %40 = sbr.rel (0) target = $region25
    $region24: #{forward.3} parent=1 // pred_region
      _
    $region25: #{forward.3} parent=1 // pred_fallthru
      _
    // Predicated region
    $region26: #{forward.3} parent=1 // pred_check
      _
    $region27: #{forward.3} parent=1 // pred_check_branch
      %42 = sbr.rel (0) target = $region29
    $region28: #{forward.3} parent=1 // pred_region
      _
    $region29: #{forward.3} parent=1 // pred_fallthru
      _
    // Predicated region
    $region30: #{forward.3} parent=1 // pred_check
      _
    $region31: #{forward.3} parent=1 // pred_check_branch
      %44 = sbr.rel (0) target = $region33
    $region32: #{forward.3} parent=1 // pred_region
      _
    $region33: #{forward.3} parent=1 // pred_fallthru
      _
    // Predicated region
    $region34: #{forward.3} parent=1 // pred_check
      _
    $region35: #{forward.3} parent=1 // pred_check_branch
      %46 = sbr.rel (0) target = $region37
    $region36: #{forward.3} parent=1 // pred_region
      _
    $region37: #{forward.3} parent=1 // pred_fallthru
      _
    // Predicated region
    $region38: #{forward.3} parent=1 // pred_check
      _
    $region39: #{forward.3} parent=1 // pred_check_branch
      %48 = sbr.rel (0) target = $region41
    $region40: #{forward.3} parent=1 // pred_region
      _
    $region41: #{forward.3} parent=1 // pred_fallthru
      _
    // Predicated region
    $region42: #{forward.3} parent=1 // pred_check
      _
    $region43: #{forward.3} parent=1 // pred_check_branch
      %50 = sbr.rel (0) target = $region45
    $region44: #{forward.3} parent=1 // pred_region
      _
    $region45: #{forward.3} parent=1 // pred_fallthru
      _
    // Predicated region
    $region46: #{forward.3} parent=1 // pred_check
      _
    $region47: #{forward.3} parent=1 // pred_check_branch
      %52 = sbr.rel (0) target = $region49
    $region48: #{forward.3} parent=1 // pred_region
      _
    $region49: #{forward.3} parent=1 // pred_fallthru
      _
    // Predicated region
    $region50: #{forward.3} parent=1 // pred_check
      _
    $region51: #{forward.3} parent=1 // pred_check_branch
      %54 = sbr.rel (0) target = $region53
    $region52: #{forward.3} parent=1 // pred_region
      %56 = dma.done [#allocation4], 16
    $region53: #{forward.3} parent=1 // pred_fallthru
      _
    %57 = sfence
    %s58 = sld [smem:[#allocation2]]
    %s59 = sld [smem:[#allocation2 + $0x1]]
    %v60 = vld [vmem:[%s1] sm:$0xff]
    %v61 = vld [vmem:[%s1 + $0x8] sm:$0xff]
    %v62 = vld [vmem:[%s1 + $0x10] sm:$0xff]
    %v63 = vld [vmem:[%s1 + $0x18] sm:$0xff]
    %v64 = vld [vmem:[%s1 + $0x20] sm:$0xff]
    %v65 = vld [vmem:[%s1 + $0x28] sm:$0xff]
    %v66 = vld [vmem:[%s1 + $0x30] sm:$0xff]
    %v67 = vld [vmem:[%s1 + $0x38] sm:$0xff]
    %v68 = vld [vmem:[%s1 + $0x40] sm:$0xff]
    %v69 = vld [vmem:[%s1 + $0x48] sm:$0xff]
    %v70 = vld [vmem:[%s1 + $0x50] sm:$0xff]
    %v71 = vld [vmem:[%s1 + $0x58] sm:$0xff]
    %v72 = vld [vmem:[%s1 + $0x60] sm:$0xff]
    %v73 = vld [vmem:[%s1 + $0x68] sm:$0xff]
    %v74 = vld [vmem:[%s1 + $0x70] sm:$0xff]
    %v75 = vld [vmem:[%s1 + $0x78] sm:$0xff]
    %v76 = vld [vmem:[%s2] sm:$0xff]
    %v77 = vld [vmem:[%s2 + $0x8] sm:$0xff]
    %v78 = vld [vmem:[%s2 + $0x10] sm:$0xff]
    %v79 = vld [vmem:[%s2 + $0x18] sm:$0xff]
    %v80 = vld [vmem:[%s2 + $0x20] sm:$0xff]
    %v81 = vld [vmem:[%s2 + $0x28] sm:$0xff]
    %v82 = vld [vmem:[%s2 + $0x30] sm:$0xff]
    %v83 = vld [vmem:[%s2 + $0x38] sm:$0xff]
    %v84 = vld [vmem:[%s2 + $0x40] sm:$0xff]
    %v85 = vld [vmem:[%s2 + $0x48] sm:$0xff]
    %v86 = vld [vmem:[%s2 + $0x50] sm:$0xff]
    %v87 = vld [vmem:[%s2 + $0x58] sm:$0xff]
    %v88 = vld [vmem:[%s2 + $0x60] sm:$0xff]
    %v89 = vld [vmem:[%s2 + $0x68] sm:$0xff]
    %v90 = vld [vmem:[%s2 + $0x70] sm:$0xff]
    %v91 = vld [vmem:[%s2 + $0x78] sm:$0xff]
    %v92 = vld [vmem:[%s2 + $0x80] sm:$0xff]
    %v93 = vld [vmem:[%s2 + $0x88] sm:$0xff]
    %v94 = vld [vmem:[%s2 + $0x90] sm:$0xff]
    %v95 = vld [vmem:[%s2 + $0x98] sm:$0xff]
    %v96 = vld [vmem:[%s2 + $0xa0] sm:$0xff]
    %v97 = vld [vmem:[%s2 + $0xa8] sm:$0xff]
    %v98 = vld [vmem:[%s2 + $0xb0] sm:$0xff]
    %v99 = vld [vmem:[%s2 + $0xb8] sm:$0xff]
    %v100 = vld [vmem:[%s3] sm:$0x1]
    %v102 = vperm.slane %v100, 0
    %vm104 = vcmask 523264
    %v106 = vsel %vm104, %v61, 0
    %v109 = vsel %vm104, %v63, 0
    %v112 = vsel %vm104, %v65, 0
    %v115 = vsel %vm104, %v67, 0
    %v118 = vsel %vm104, %v69, 0
    %v121 = vsel %vm104, %v71, 0
    %v124 = vsel %vm104, %v73, 0
    %v127 = vsel %vm104, %v75, 0
    %129 = vmatpush.msra.mxu0 %v91
    %130 = vmatpush.msra.mxu0 %v90
    %131 = vmatpush.msra.mxu0 %v89
    %132 = vmatpush.msra.mxu0 %v88
    %133 = vmatpush.msra.mxu0 %v87
    %134 = vmatpush.msra.mxu0 %v86
    %135 = vmatpush.msra.mxu0 %v85
    %136 = vmatpush.msra.mxu0 %v84
    %137 = vmatpush.msra.mxu0 %v83
    %138 = vmatpush.msra.mxu0 %v82
    %139 = vmatpush.msra.mxu0 %v81
    %140 = vmatpush.msra.mxu0 %v80
    %141 = vmatpush.msra.mxu0 %v79
    %142 = vmatpush.msra.mxu0 %v78
    %143 = vmatpush.msra.mxu0 %v77
    %144 = vmatpush.msra.mxu0 %v76
    %145 = vmatmul.f32.gmra.mxu0 %v60
    %v146 = vpop.f32.mrf.mxu0
    %v147 = vadd.f32 %v102, %v146
    %148 = vmatmul.f32.gmra.mxu0 %v62
    %v149 = vpop.f32.mrf.mxu0
    %v150 = vadd.f32 %v102, %v149
    %151 = vmatmul.f32.gmra.mxu0 %v64
    %v152 = vpop.f32.mrf.mxu0
    %v153 = vadd.f32 %v102, %v152
    %154 = vmatmul.f32.gmra.mxu0 %v66
    %v155 = vpop.f32.mrf.mxu0
    %v156 = vadd.f32 %v102, %v155
    %157 = vmatmul.f32.gmra.mxu0 %v68
    %v158 = vpop.f32.mrf.mxu0
    %v159 = vadd.f32 %v102, %v158
    %160 = vmatmul.f32.gmra.mxu0 %v70
    %v161 = vpop.f32.mrf.mxu0
    %v162 = vadd.f32 %v102, %v161
    %163 = vmatmul.f32.gmra.mxu0 %v72
    %v164 = vpop.f32.mrf.mxu0
    %v165 = vadd.f32 %v102, %v164
    %166 = vmatmul.f32.gmra.mxu0 %v74
    %v167 = vpop.f32.mrf.mxu0
    %v168 = vadd.f32 %v102, %v167
    %169 = vdwg.mxu0
    %170 = vmatpush.msra.mxu0 0.0
    %171 = vmatpush.msra.mxu0 0.0
    %172 = vmatpush.msra.mxu0 0.0
    %173 = vmatpush.msra.mxu0 0.0
    %174 = vmatpush.msra.mxu0 0.0
    %175 = vmatpush.msra.mxu0 0.0
    %176 = vmatpush.msra.mxu0 0.0
    %177 = vmatpush.msra.mxu0 0.0
    %178 = vmatpush.msra.mxu0 %v99
    %179 = vmatpush.msra.mxu0 %v98
    %180 = vmatpush.msra.mxu0 %v97
    %181 = vmatpush.msra.mxu0 %v96
    %182 = vmatpush.msra.mxu0 %v95
    %183 = vmatpush.msra.mxu0 %v94
    %184 = vmatpush.msra.mxu0 %v93
    %185 = vmatpush.msra.mxu0 %v92
    %186 = vmatmul.f32.gmra.mxu0 %v106
    %v187 = vpop.f32.mrf.mxu0
    %v188 = vadd.f32 %v147, %v187
    %189 = vmatmul.f32.gmra.mxu0 %v109
    %v190 = vpop.f32.mrf.mxu0
    %v191 = vadd.f32 %v150, %v190
    %192 = vmatmul.f32.gmra.mxu0 %v112
    %v193 = vpop.f32.mrf.mxu0
    %v194 = vadd.f32 %v153, %v193
    %195 = vmatmul.f32.gmra.mxu0 %v115
    %v196 = vpop.f32.mrf.mxu0
    %v197 = vadd.f32 %v156, %v196
    %198 = vmatmul.f32.gmra.mxu0 %v118
    %v199 = vpop.f32.mrf.mxu0
    %v200 = vadd.f32 %v159, %v199
    %201 = vmatmul.f32.gmra.mxu0 %v121
    %v202 = vpop.f32.mrf.mxu0
    %v203 = vadd.f32 %v162, %v202
    %204 = vmatmul.f32.gmra.mxu0 %v124
    %v205 = vpop.f32.mrf.mxu0
    %v206 = vadd.f32 %v165, %v205
    %207 = vmatmul.f32.gmra.mxu0 %v127
    %v208 = vpop.f32.mrf.mxu0
    %v209 = vadd.f32 %v168, %v208
    %210 = vdwg.mxu0
    %v211 = vld [vmem:[%s4] sm:$0xff]
    %v212 = vld [vmem:[%s4 + $0x8] sm:$0xff]
    %v213 = vld [vmem:[%s4 + $0x10] sm:$0xff]
    %v214 = vld [vmem:[%s4 + $0x18] sm:$0xff]
    %v215 = vld [vmem:[%s4 + $0x20] sm:$0xff]
    %v216 = vld [vmem:[%s4 + $0x28] sm:$0xff]
    %v217 = vld [vmem:[%s4 + $0x30] sm:$0xff]
    %v218 = vld [vmem:[%s4 + $0x38] sm:$0xff]
    %v219 = vld [vmem:[%s4 + $0x40] sm:$0xff]
    %v220 = vld [vmem:[%s4 + $0x48] sm:$0xff]
    %v221 = vld [vmem:[%s4 + $0x50] sm:$0xff]
    %v222 = vld [vmem:[%s4 + $0x58] sm:$0xff]
    %v223 = vld [vmem:[%s4 + $0x60] sm:$0xff]
    %v224 = vld [vmem:[%s4 + $0x68] sm:$0xff]
    %v225 = vld [vmem:[%s4 + $0x70] sm:$0xff]
    %v226 = vld [vmem:[%s4 + $0x78] sm:$0xff]
    %v227 = vld [vmem:[%s4 + $0x80] sm:$0xff]
    %v228 = vld [vmem:[%s4 + $0x88] sm:$0xff]
    %v229 = vld [vmem:[%s4 + $0x90] sm:$0xff]
    %v230 = vld [vmem:[%s4 + $0x98] sm:$0xff]
    %v231 = vld [vmem:[%s4 + $0xa0] sm:$0xff]
    %v232 = vld [vmem:[%s4 + $0xa8] sm:$0xff]
    %v233 = vld [vmem:[%s4 + $0xb0] sm:$0xff]
    %v234 = vld [vmem:[%s4 + $0xb8] sm:$0xff]
    %v235 = vld [vmem:[%s5] sm:$0x1]
    %v237 = vperm.slane %v235, 0
    %239 = vmatpush.msra.mxu0 %v226
    %240 = vmatpush.msra.mxu0 %v225
    %241 = vmatpush.msra.mxu0 %v224
    %242 = vmatpush.msra.mxu0 %v223
    %243 = vmatpush.msra.mxu0 %v222
    %244 = vmatpush.msra.mxu0 %v221
    %245 = vmatpush.msra.mxu0 %v220
    %246 = vmatpush.msra.mxu0 %v219
    %247 = vmatpush.msra.mxu0 %v218
    %248 = vmatpush.msra.mxu0 %v217
    %249 = vmatpush.msra.mxu0 %v216
    %250 = vmatpush.msra.mxu0 %v215
    %251 = vmatpush.msra.mxu0 %v214
    %252 = vmatpush.msra.mxu0 %v213
    %253 = vmatpush.msra.mxu0 %v212
    %254 = vmatpush.msra.mxu0 %v211
    %255 = vmatmul.f32.gmra.mxu0 %v60
    %v256 = vpop.f32.mrf.mxu0
    %v257 = vadd.f32 %v237, %v256
    %258 = vmatmul.f32.gmra.mxu0 %v62
    %v259 = vpop.f32.mrf.mxu0
    %v260 = vadd.f32 %v237, %v259
    %261 = vmatmul.f32.gmra.mxu0 %v64
    %v262 = vpop.f32.mrf.mxu0
    %v263 = vadd.f32 %v237, %v262
    %264 = vmatmul.f32.gmra.mxu0 %v66
    %v265 = vpop.f32.mrf.mxu0
    %v266 = vadd.f32 %v237, %v265
    %267 = vmatmul.f32.gmra.mxu0 %v68
    %v268 = vpop.f32.mrf.mxu0
    %v269 = vadd.f32 %v237, %v268
    %270 = vmatmul.f32.gmra.mxu0 %v70
    %v271 = vpop.f32.mrf.mxu0
    %v272 = vadd.f32 %v237, %v271
    %273 = vmatmul.f32.gmra.mxu0 %v72
    %v274 = vpop.f32.mrf.mxu0
    %v275 = vadd.f32 %v237, %v274
    %276 = vmatmul.f32.gmra.mxu0 %v74
    %v277 = vpop.f32.mrf.mxu0
    %v278 = vadd.f32 %v237, %v277
    %279 = vdwg.mxu0
    %280 = vmatpush.msra.mxu0 0.0
    %281 = vmatpush.msra.mxu0 0.0
    %282 = vmatpush.msra.mxu0 0.0
    %283 = vmatpush.msra.mxu0 0.0
    %284 = vmatpush.msra.mxu0 0.0
    %285 = vmatpush.msra.mxu0 0.0
    %286 = vmatpush.msra.mxu0 0.0
    %287 = vmatpush.msra.mxu0 0.0
    %288 = vmatpush.msra.mxu0 %v234
    %289 = vmatpush.msra.mxu0 %v233
    %290 = vmatpush.msra.mxu0 %v232
    %291 = vmatpush.msra.mxu0 %v231
    %292 = vmatpush.msra.mxu0 %v230
    %293 = vmatpush.msra.mxu0 %v229
    %294 = vmatpush.msra.mxu0 %v228
    %295 = vmatpush.msra.mxu0 %v227
    %296 = vmatmul.f32.gmra.mxu0 %v106
    %v297 = vpop.f32.mrf.mxu0
    %v298 = vadd.f32 %v257, %v297
    %299 = vmatmul.f32.gmra.mxu0 %v109
    %v300 = vpop.f32.mrf.mxu0
    %v301 = vadd.f32 %v260, %v300
    %302 = vmatmul.f32.gmra.mxu0 %v112
    %v303 = vpop.f32.mrf.mxu0
    %v304 = vadd.f32 %v263, %v303
    %305 = vmatmul.f32.gmra.mxu0 %v115
    %v306 = vpop.f32.mrf.mxu0
    %v307 = vadd.f32 %v266, %v306
    %308 = vmatmul.f32.gmra.mxu0 %v118
    %v309 = vpop.f32.mrf.mxu0
    %v310 = vadd.f32 %v269, %v309
    %311 = vmatmul.f32.gmra.mxu0 %v121
    %v312 = vpop.f32.mrf.mxu0
    %v313 = vadd.f32 %v272, %v312
    %314 = vmatmul.f32.gmra.mxu0 %v124
    %v315 = vpop.f32.mrf.mxu0
    %v316 = vadd.f32 %v275, %v315
    %317 = vmatmul.f32.gmra.mxu0 %v127
    %v318 = vpop.f32.mrf.mxu0
    %v319 = vadd.f32 %v278, %v318
    %320 = vdwg.mxu0
    %v321 = vmul.f32 %v298, 0.5
    %v322 = vmul.f32 %v301, 0.5
    %v323 = vmul.f32 %v304, 0.5
    %v324 = vmul.f32 %v307, 0.5
    %v325 = vmul.f32 %v310, 0.5
    %v326 = vmul.f32 %v313, 0.5
    %v327 = vmul.f32 %v316, 0.5
    %v328 = vmul.f32 %v319, 0.5
    %v329 = vmul.f32 %v321, 1.442695
    %v330 = vpow.pop %v329
    %v331 = vmul.f32 %v322, 1.442695
    %v332 = vpow.pop %v331
    %v333 = vmul.f32 %v323, 1.442695
    %v334 = vpow.pop %v333
    %v335 = vmul.f32 %v324, 1.442695
    %v336 = vpow.pop %v335
    %v337 = vmul.f32 %v325, 1.442695
    %v338 = vpow.pop %v337
    %v339 = vmul.f32 %v326, 1.442695
    %v340 = vpow.pop %v339
    %v341 = vmul.f32 %v327, 1.442695
    %v342 = vpow.pop %v341
    %v343 = vmul.f32 %v328, 1.442695
    %v344 = vpow.pop %v343
    %v345 = vld [vmem:[%s6] sm:$0xff]
    %v346 = vld [vmem:[%s6 + $0x8] sm:$0xff]
    %v347 = vld [vmem:[%s6 + $0x10] sm:$0xff]
    %v348 = vld [vmem:[%s6 + $0x18] sm:$0xff]
    %v349 = vld [vmem:[%s6 + $0x20] sm:$0xff]
    %v350 = vld [vmem:[%s6 + $0x28] sm:$0xff]
    %v351 = vld [vmem:[%s6 + $0x30] sm:$0xff]
    %v352 = vld [vmem:[%s6 + $0x38] sm:$0xff]
    %v353 = vld [vmem:[%s6 + $0x40] sm:$0xff]
    %v354 = vld [vmem:[%s6 + $0x48] sm:$0xff]
    %v355 = vld [vmem:[%s6 + $0x50] sm:$0xff]
    %v356 = vld [vmem:[%s6 + $0x58] sm:$0xff]
    %v357 = vld [vmem:[%s6 + $0x60] sm:$0xff]
    %v358 = vld [vmem:[%s6 + $0x68] sm:$0xff]
    %v359 = vld [vmem:[%s6 + $0x70] sm:$0xff]
    %v360 = vld [vmem:[%s6 + $0x78] sm:$0xff]
    %v361 = vld [vmem:[%s6 + $0x80] sm:$0xff]
    %v362 = vld [vmem:[%s6 + $0x88] sm:$0xff]
    %v363 = vld [vmem:[%s6 + $0x90] sm:$0xff]
    %v364 = vld [vmem:[%s6 + $0x98] sm:$0xff]
    %v365 = vld [vmem:[%s6 + $0xa0] sm:$0xff]
    %v366 = vld [vmem:[%s6 + $0xa8] sm:$0xff]
    %v367 = vld [vmem:[%s6 + $0xb0] sm:$0xff]
    %v368 = vld [vmem:[%s6 + $0xb8] sm:$0xff]
    %v369 = vld [vmem:[%s6 + $0xc0] sm:$0xff]
    %v370 = vld [vmem:[%s6 + $0xc8] sm:$0xff]
    %v371 = vld [vmem:[%s6 + $0xd0] sm:$0xff]
    %v372 = vld [vmem:[%s6 + $0xd8] sm:$0xff]
    %v373 = vld [vmem:[%s6 + $0xe0] sm:$0xff]
    %v374 = vld [vmem:[%s6 + $0xe8] sm:$0xff]
    %v375 = vld [vmem:[%s6 + $0xf0] sm:$0xff]
    %v376 = vld [vmem:[%s6 + $0xf8] sm:$0xff]
    %v377 = vmul.f32 %v330, %v345
    %v378 = vmul.f32 %v332, %v346
    %v379 = vmul.f32 %v334, %v347
    %v380 = vmul.f32 %v336, %v348
    %v381 = vmul.f32 %v338, %v349
    %v382 = vmul.f32 %v340, %v350
    %v383 = vmul.f32 %v342, %v351
    %v384 = vmul.f32 %v344, %v352
    %v385 = vmul.f32 %v330, %v353
    %v386 = vmul.f32 %v332, %v354
    %v387 = vmul.f32 %v334, %v355
    %v388 = vmul.f32 %v336, %v356
    %v389 = vmul.f32 %v338, %v357
    %v390 = vmul.f32 %v340, %v358
    %v391 = vmul.f32 %v342, %v359
    %v392 = vmul.f32 %v344, %v360
    %v393 = vmul.f32 %v330, %v361
    %v394 = vmul.f32 %v332, %v362
    %v395 = vmul.f32 %v334, %v363
    %v396 = vmul.f32 %v336, %v364
    %v397 = vmul.f32 %v338, %v365
    %v398 = vmul.f32 %v340, %v366
    %v399 = vmul.f32 %v342, %v367
    %v400 = vmul.f32 %v344, %v368
    %v401 = vmul.f32 %v330, %v369
    %v402 = vmul.f32 %v332, %v370
    %v403 = vmul.f32 %v334, %v371
    %v404 = vmul.f32 %v336, %v372
    %v405 = vmul.f32 %v338, %v373
    %v406 = vmul.f32 %v340, %v374
    %v407 = vmul.f32 %v342, %v375
    %v408 = vmul.f32 %v344, %v376
    %v409 = vadd.f32 %v188, %v377
    %v410 = vadd.f32 %v191, %v378
    %v411 = vadd.f32 %v194, %v379
    %v412 = vadd.f32 %v197, %v380
    %v413 = vadd.f32 %v200, %v381
    %v414 = vadd.f32 %v203, %v382
    %v415 = vadd.f32 %v206, %v383
    %v416 = vadd.f32 %v209, %v384
    %v417 = vadd.f32 %v188, %v385
    %v418 = vadd.f32 %v191, %v386
    %v419 = vadd.f32 %v194, %v387
    %v420 = vadd.f32 %v197, %v388
    %v421 = vadd.f32 %v200, %v389
    %v422 = vadd.f32 %v203, %v390
    %v423 = vadd.f32 %v206, %v391
    %v424 = vadd.f32 %v209, %v392
    %v425 = vadd.f32 %v188, %v393
    %v426 = vadd.f32 %v191, %v394
    %v427 = vadd.f32 %v194, %v395
    %v428 = vadd.f32 %v197, %v396
    %v429 = vadd.f32 %v200, %v397
    %v430 = vadd.f32 %v203, %v398
    %v431 = vadd.f32 %v206, %v399
    %v432 = vadd.f32 %v209, %v400
    %v433 = vadd.f32 %v188, %v401
    %v434 = vadd.f32 %v191, %v402
    %v435 = vadd.f32 %v194, %v403
    %v436 = vadd.f32 %v197, %v404
    %v437 = vadd.f32 %v200, %v405
    %v438 = vadd.f32 %v203, %v406
    %v439 = vadd.f32 %v206, %v407
    %v440 = vadd.f32 %v209, %v408
    %v441 = vmul.f32 %v409, 0.18215
    %v442 = vmul.f32 %v410, 0.18215
    %v443 = vmul.f32 %v411, 0.18215
    %v444 = vmul.f32 %v412, 0.18215
    %v445 = vmul.f32 %v413, 0.18215
    %v446 = vmul.f32 %v414, 0.18215
    %v447 = vmul.f32 %v415, 0.18215
    %v448 = vmul.f32 %v416, 0.18215
    %v449 = vmul.f32 %v417, 0.18215
    %v450 = vmul.f32 %v418, 0.18215
    %v451 = vmul.f32 %v419, 0.18215
    %v452 = vmul.f32 %v420, 0.18215
    %v453 = vmul.f32 %v421, 0.18215
    %v454 = vmul.f32 %v422, 0.18215
    %v455 = vmul.f32 %v423, 0.18215
    %v456 = vmul.f32 %v424, 0.18215
    %v457 = vmul.f32 %v425, 0.18215
    %v458 = vmul.f32 %v426, 0.18215
    %v459 = vmul.f32 %v427, 0.18215
    %v460 = vmul.f32 %v428, 0.18215
    %v461 = vmul.f32 %v429, 0.18215
    %v462 = vmul.f32 %v430, 0.18215
    %v463 = vmul.f32 %v431, 0.18215
    %v464 = vmul.f32 %v432, 0.18215
    %v465 = vmul.f32 %v433, 0.18215
    %v466 = vmul.f32 %v434, 0.18215
    %v467 = vmul.f32 %v435, 0.18215
    %v468 = vmul.f32 %v436, 0.18215
    %v469 = vmul.f32 %v437, 0.18215
    %v470 = vmul.f32 %v438, 0.18215
    %v471 = vmul.f32 %v439, 0.18215
    %v472 = vmul.f32 %v440, 0.18215
    %v473 = vstv %s58
    %v474 = vmul.f32 %v473, %v441
    %v475 = vmul.f32 %v473, %v442
    %v476 = vmul.f32 %v473, %v443
    %v477 = vmul.f32 %v473, %v444
    %v478 = vmul.f32 %v473, %v445
    %v479 = vmul.f32 %v473, %v446
    %v480 = vmul.f32 %v473, %v447
    %v481 = vmul.f32 %v473, %v448
    %v482 = vmul.f32 %v473, %v449
    %v483 = vmul.f32 %v473, %v450
    %v484 = vmul.f32 %v473, %v451
    %v485 = vmul.f32 %v473, %v452
    %v486 = vmul.f32 %v473, %v453
    %v487 = vmul.f32 %v473, %v454
    %v488 = vmul.f32 %v473, %v455
    %v489 = vmul.f32 %v473, %v456
    %v490 = vmul.f32 %v473, %v457
    %v491 = vmul.f32 %v473, %v458
    %v492 = vmul.f32 %v473, %v459
    %v493 = vmul.f32 %v473, %v460
    %v494 = vmul.f32 %v473, %v461
    %v495 = vmul.f32 %v473, %v462
    %v496 = vmul.f32 %v473, %v463
    %v497 = vmul.f32 %v473, %v464
    %v498 = vmul.f32 %v473, %v465
    %v499 = vmul.f32 %v473, %v466
    %v500 = vmul.f32 %v473, %v467
    %v501 = vmul.f32 %v473, %v468
    %v502 = vmul.f32 %v473, %v469
    %v503 = vmul.f32 %v473, %v470
    %v504 = vmul.f32 %v473, %v471
    %v505 = vmul.f32 %v473, %v472
    %v506 = vld [vmem:[%s7] sm:$0xff]
    %v507 = vld [vmem:[%s7 + $0x8] sm:$0xff]
    %v508 = vld [vmem:[%s7 + $0x10] sm:$0xff]
    %v509 = vld [vmem:[%s7 + $0x18] sm:$0xff]
    %v510 = vld [vmem:[%s7 + $0x20] sm:$0xff]
    %v511 = vld [vmem:[%s7 + $0x28] sm:$0xff]
    %v512 = vld [vmem:[%s7 + $0x30] sm:$0xff]
    %v513 = vld [vmem:[%s7 + $0x38] sm:$0xff]
    %v514 = vld [vmem:[%s7 + $0x40] sm:$0xff]
    %v515 = vld [vmem:[%s7 + $0x48] sm:$0xff]
    %v516 = vld [vmem:[%s7 + $0x50] sm:$0xff]
    %v517 = vld [vmem:[%s7 + $0x58] sm:$0xff]
    %v518 = vld [vmem:[%s7 + $0x60] sm:$0xff]
    %v519 = vld [vmem:[%s7 + $0x68] sm:$0xff]
    %v520 = vld [vmem:[%s7 + $0x70] sm:$0xff]
    %v521 = vld [vmem:[%s7 + $0x78] sm:$0xff]
    %v522 = vld [vmem:[%s7 + $0x80] sm:$0xff]
    %v523 = vld [vmem:[%s7 + $0x88] sm:$0xff]
    %v524 = vld [vmem:[%s7 + $0x90] sm:$0xff]
    %v525 = vld [vmem:[%s7 + $0x98] sm:$0xff]
    %v526 = vld [vmem:[%s7 + $0xa0] sm:$0xff]
    %v527 = vld [vmem:[%s7 + $0xa8] sm:$0xff]
    %v528 = vld [vmem:[%s7 + $0xb0] sm:$0xff]
    %v529 = vld [vmem:[%s7 + $0xb8] sm:$0xff]
    %v530 = vld [vmem:[%s7 + $0xc0] sm:$0xff]
    %v531 = vld [vmem:[%s7 + $0xc8] sm:$0xff]
    %v532 = vld [vmem:[%s7 + $0xd0] sm:$0xff]
    %v533 = vld [vmem:[%s7 + $0xd8] sm:$0xff]
    %v534 = vld [vmem:[%s7 + $0xe0] sm:$0xff]
    %v535 = vld [vmem:[%s7 + $0xe8] sm:$0xff]
    %v536 = vld [vmem:[%s7 + $0xf0] sm:$0xff]
    %v537 = vld [vmem:[%s7 + $0xf8] sm:$0xff]
    %v538 = vstv %s59
    %v539 = vmul.f32 %v538, %v506
    %v540 = vmul.f32 %v538, %v507
    %v541 = vmul.f32 %v538, %v508
    %v542 = vmul.f32 %v538, %v509
    %v543 = vmul.f32 %v538, %v510
    %v544 = vmul.f32 %v538, %v511
    %v545 = vmul.f32 %v538, %v512
    %v546 = vmul.f32 %v538, %v513
    %v547 = vmul.f32 %v538, %v514
    %v548 = vmul.f32 %v538, %v515
    %v549 = vmul.f32 %v538, %v516
    %v550 = vmul.f32 %v538, %v517
    %v551 = vmul.f32 %v538, %v518
    %v552 = vmul.f32 %v538, %v519
    %v553 = vmul.f32 %v538, %v520
    %v554 = vmul.f32 %v538, %v521
    %v555 = vmul.f32 %v538, %v522
    %v556 = vmul.f32 %v538, %v523
    %v557 = vmul.f32 %v538, %v524
    %v558 = vmul.f32 %v538, %v525
    %v559 = vmul.f32 %v538, %v526
    %v560 = vmul.f32 %v538, %v527
    %v561 = vmul.f32 %v538, %v528
    %v562 = vmul.f32 %v538, %v529
    %v563 = vmul.f32 %v538, %v530
    %v564 = vmul.f32 %v538, %v531
    %v565 = vmul.f32 %v538, %v532
    %v566 = vmul.f32 %v538, %v533
    %v567 = vmul.f32 %v538, %v534
    %v568 = vmul.f32 %v538, %v535
    %v569 = vmul.f32 %v538, %v536
    %v570 = vmul.f32 %v538, %v537
    %v571 = vadd.f32 %v474, %v539
    %v572 = vadd.f32 %v475, %v540
    %v573 = vadd.f32 %v476, %v541
    %v574 = vadd.f32 %v477, %v542
    %v575 = vadd.f32 %v478, %v543
    %v576 = vadd.f32 %v479, %v544
    %v577 = vadd.f32 %v480, %v545
    %v578 = vadd.f32 %v481, %v546
    %v579 = vadd.f32 %v482, %v547
    %v580 = vadd.f32 %v483, %v548
    %v581 = vadd.f32 %v484, %v549
    %v582 = vadd.f32 %v485, %v550
    %v583 = vadd.f32 %v486, %v551
    %v584 = vadd.f32 %v487, %v552
    %v585 = vadd.f32 %v488, %v553
    %v586 = vadd.f32 %v489, %v554
    %v587 = vadd.f32 %v490, %v555
    %v588 = vadd.f32 %v491, %v556
    %v589 = vadd.f32 %v492, %v557
    %v590 = vadd.f32 %v493, %v558
    %v591 = vadd.f32 %v494, %v559
    %v592 = vadd.f32 %v495, %v560
    %v593 = vadd.f32 %v496, %v561
    %v594 = vadd.f32 %v497, %v562
    %v595 = vadd.f32 %v498, %v563
    %v596 = vadd.f32 %v499, %v564
    %v597 = vadd.f32 %v500, %v565
    %v598 = vadd.f32 %v501, %v566
    %v599 = vadd.f32 %v502, %v567
    %v600 = vadd.f32 %v503, %v568
    %v601 = vadd.f32 %v504, %v569
    %v602 = vadd.f32 %v505, %v570
    %v603 = vld [vmem:[%s8] sm:$0xf]
    %v604 = vld [vmem:[%s9] sm:$0x1]
    %v606 = vperm.slane %v604, 0
    %vm608 = vcmask 31744
    %v610 = vsel %vm608, %v571, 0
    %v613 = vsel %vm608, %v572, 0
    %v616 = vsel %vm608, %v573, 0
    %v619 = vsel %vm608, %v574, 0
    %v622 = vsel %vm608, %v575, 0
    %v625 = vsel %vm608, %v576, 0
    %v628 = vsel %vm608, %v577, 0
    %v631 = vsel %vm608, %v578, 0
    %v634 = vsel %vm608, %v579, 0
    %v637 = vsel %vm608, %v580, 0
    %v640 = vsel %vm608, %v581, 0
    %v643 = vsel %vm608, %v582, 0
    %v646 = vsel %vm608, %v583, 0
    %v649 = vsel %vm608, %v584, 0
    %v652 = vsel %vm608, %v585, 0
    %v655 = vsel %vm608, %v586, 0
    %v658 = vsel %vm608, %v587, 0
    %v661 = vsel %vm608, %v588, 0
    %v664 = vsel %vm608, %v589, 0
    %v667 = vsel %vm608, %v590, 0
    %v670 = vsel %vm608, %v591, 0
    %v673 = vsel %vm608, %v592, 0
    %v676 = vsel %vm608, %v593, 0
    %v679 = vsel %vm608, %v594, 0
    %v682 = vsel %vm608, %v595, 0
    %v685 = vsel %vm608, %v596, 0
    %v688 = vsel %vm608, %v597, 0
    %v691 = vsel %vm608, %v598, 0
    %v694 = vsel %vm608, %v599, 0
    %v697 = vsel %vm608, %v600, 0
    %v700 = vsel %vm608, %v601, 0
    %v703 = vsel %vm608, %v602, 0
    %vm705 = vcmask 1043456
    %v707 = vsel %vm705, %v603, 0
    %709 = vmatpush.msra.mxu0 0.0
    %710 = vmatpush.msra.mxu0 0.0
    %711 = vmatpush.msra.mxu0 0.0
    %712 = vmatpush.msra.mxu0 0.0
    %713 = vmatpush.msra.mxu0 0.0
    %714 = vmatpush.msra.mxu0 0.0
    %715 = vmatpush.msra.mxu0 0.0
    %716 = vmatpush.msra.mxu0 0.0
    %717 = vmatpush.msra.mxu0 0.0
    %718 = vmatpush.msra.mxu0 0.0
    %719 = vmatpush.msra.mxu0 0.0
    %720 = vmatpush.msra.mxu0 0.0
    %721 = vmatpush.msra.mxu0 0.0
    %722 = vmatpush.msra.mxu0 0.0
    %723 = vmatpush.msra.mxu0 0.0
    %724 = vmatpush.msra.mxu0 %v707
    %725 = vmatmul.f32.gmra.mxu0 %v610
    %v726 = vpop.f32.mrf.mxu0
    %v727 = vadd.f32 %v606, %v726
    %728 = vmatmul.f32.gmra.mxu0 %v613
    %v729 = vpop.f32.mrf.mxu0
    %v730 = vadd.f32 %v606, %v729
    %731 = vmatmul.f32.gmra.mxu0 %v616
    %v732 = vpop.f32.mrf.mxu0
    %v733 = vadd.f32 %v606, %v732
    %734 = vmatmul.f32.gmra.mxu0 %v619
    %v735 = vpop.f32.mrf.mxu0
    %v736 = vadd.f32 %v606, %v735
    %737 = vmatmul.f32.gmra.mxu0 %v622
    %v738 = vpop.f32.mrf.mxu0
    %v739 = vadd.f32 %v606, %v738
    %740 = vmatmul.f32.gmra.mxu0 %v625
    %v741 = vpop.f32.mrf.mxu0
    %v742 = vadd.f32 %v606, %v741
    %743 = vmatmul.f32.gmra.mxu0 %v628
    %v744 = vpop.f32.mrf.mxu0
    %v745 = vadd.f32 %v606, %v744
    %746 = vmatmul.f32.gmra.mxu0 %v631
    %v747 = vpop.f32.mrf.mxu0
    %v748 = vadd.f32 %v606, %v747
    %749 = vmatmul.f32.gmra.mxu0 %v634
    %v750 = vpop.f32.mrf.mxu0
    %v751 = vadd.f32 %v606, %v750
    %752 = vmatmul.f32.gmra.mxu0 %v637
    %v753 = vpop.f32.mrf.mxu0
    %v754 = vadd.f32 %v606, %v753
    %755 = vmatmul.f32.gmra.mxu0 %v640
    %v756 = vpop.f32.mrf.mxu0
    %v757 = vadd.f32 %v606, %v756
    %758 = vmatmul.f32.gmra.mxu0 %v643
    %v759 = vpop.f32.mrf.mxu0
    %v760 = vadd.f32 %v606, %v759
    %761 = vmatmul.f32.gmra.mxu0 %v646
    %v762 = vpop.f32.mrf.mxu0
    %v763 = vadd.f32 %v606, %v762
    %764 = vmatmul.f32.gmra.mxu0 %v649
    %v765 = vpop.f32.mrf.mxu0
    %v766 = vadd.f32 %v606, %v765
    %767 = vmatmul.f32.gmra.mxu0 %v652
    %v768 = vpop.f32.mrf.mxu0
    %v769 = vadd.f32 %v606, %v768
    %770 = vmatmul.f32.gmra.mxu0 %v655
    %v771 = vpop.f32.mrf.mxu0
    %v772 = vadd.f32 %v606, %v771
    %773 = vmatmul.f32.gmra.mxu0 %v658
    %v774 = vpop.f32.mrf.mxu0
    %v775 = vadd.f32 %v606, %v774
    %776 = vmatmul.f32.gmra.mxu0 %v661
    %v777 = vpop.f32.mrf.mxu0
    %v778 = vadd.f32 %v606, %v777
    %779 = vmatmul.f32.gmra.mxu0 %v664
    %v780 = vpop.f32.mrf.mxu0
    %v781 = vadd.f32 %v606, %v780
    %782 = vmatmul.f32.gmra.mxu0 %v667
    %v783 = vpop.f32.mrf.mxu0
    %v784 = vadd.f32 %v606, %v783
    %785 = vmatmul.f32.gmra.mxu0 %v670
    %v786 = vpop.f32.mrf.mxu0
    %v787 = vadd.f32 %v606, %v786
    %788 = vmatmul.f32.gmra.mxu0 %v673
    %v789 = vpop.f32.mrf.mxu0
    %v790 = vadd.f32 %v606, %v789
    %791 = vmatmul.f32.gmra.mxu0 %v676
    %v792 = vpop.f32.mrf.mxu0
    %v793 = vadd.f32 %v606, %v792
    %794 = vmatmul.f32.gmra.mxu0 %v679
    %v795 = vpop.f32.mrf.mxu0
    %v796 = vadd.f32 %v606, %v795
    %797 = vmatmul.f32.gmra.mxu0 %v682
    %v798 = vpop.f32.mrf.mxu0
    %v799 = vadd.f32 %v606, %v798
    %800 = vmatmul.f32.gmra.mxu0 %v685
    %v801 = vpop.f32.mrf.mxu0
    %v802 = vadd.f32 %v606, %v801
    %803 = vmatmul.f32.gmra.mxu0 %v688
    %v804 = vpop.f32.mrf.mxu0
    %v805 = vadd.f32 %v606, %v804
    %806 = vmatmul.f32.gmra.mxu0 %v691
    %v807 = vpop.f32.mrf.mxu0
    %v808 = vadd.f32 %v606, %v807
    %809 = vmatmul.f32.gmra.mxu0 %v694
    %v810 = vpop.f32.mrf.mxu0
    %v811 = vadd.f32 %v606, %v810
    %812 = vmatmul.f32.gmra.mxu0 %v697
    %v813 = vpop.f32.mrf.mxu0
    %v814 = vadd.f32 %v606, %v813
    %815 = vmatmul.f32.gmra.mxu0 %v700
    %v816 = vpop.f32.mrf.mxu0
    %v817 = vadd.f32 %v606, %v816
    %818 = vmatmul.f32.gmra.mxu0 %v703
    %v819 = vpop.f32.mrf.mxu0
    %v820 = vadd.f32 %v606, %v819
    %821 = vdwg.mxu0
    %v822 = vmul.f32 %v727, %v727
    %v823 = vmul.f32 %v730, %v730
    %v824 = vmul.f32 %v733, %v733
    %v825 = vmul.f32 %v736, %v736
    %v826 = vmul.f32 %v739, %v739
    %v827 = vmul.f32 %v742, %v742
    %v828 = vmul.f32 %v745, %v745
    %v829 = vmul.f32 %v748, %v748
    %v830 = vmul.f32 %v751, %v751
    %v831 = vmul.f32 %v754, %v754
    %v832 = vmul.f32 %v757, %v757
    %v833 = vmul.f32 %v760, %v760
    %v834 = vmul.f32 %v763, %v763
    %v835 = vmul.f32 %v766, %v766
    %v836 = vmul.f32 %v769, %v769
    %v837 = vmul.f32 %v772, %v772
    %v838 = vmul.f32 %v775, %v775
    %v839 = vmul.f32 %v778, %v778
    %v840 = vmul.f32 %v781, %v781
    %v841 = vmul.f32 %v784, %v784
    %v842 = vmul.f32 %v787, %v787
    %v843 = vmul.f32 %v790, %v790
    %v844 = vmul.f32 %v793, %v793
    %v845 = vmul.f32 %v796, %v796
    %v846 = vmul.f32 %v799, %v799
    %v847 = vmul.f32 %v802, %v802
    %v848 = vmul.f32 %v805, %v805
    %v849 = vmul.f32 %v808, %v808
    %v850 = vmul.f32 %v811, %v811
    %v851 = vmul.f32 %v814, %v814
    %v852 = vmul.f32 %v817, %v817
    %v853 = vmul.f32 %v820, %v820
    %v854 = vmul.f32 %v727, %v822
    %v855 = vmul.f32 %v730, %v823
    %v856 = vmul.f32 %v733, %v824
    %v857 = vmul.f32 %v736, %v825
    %v858 = vmul.f32 %v739, %v826
    %v859 = vmul.f32 %v742, %v827
    %v860 = vmul.f32 %v745, %v828
    %v861 = vmul.f32 %v748, %v829
    %v862 = vmul.f32 %v751, %v830
    %v863 = vmul.f32 %v754, %v831
    %v864 = vmul.f32 %v757, %v832
    %v865 = vmul.f32 %v760, %v833
    %v866 = vmul.f32 %v763, %v834
    %v867 = vmul.f32 %v766, %v835
    %v868 = vmul.f32 %v769, %v836
    %v869 = vmul.f32 %v772, %v837
    %v870 = vmul.f32 %v775, %v838
    %v871 = vmul.f32 %v778, %v839
    %v872 = vmul.f32 %v781, %v840
    %v873 = vmul.f32 %v784, %v841
    %v874 = vmul.f32 %v787, %v842
    %v875 = vmul.f32 %v790, %v843
    %v876 = vmul.f32 %v793, %v844
    %v877 = vmul.f32 %v796, %v845
    %v878 = vmul.f32 %v799, %v846
    %v879 = vmul.f32 %v802, %v847
    %v880 = vmul.f32 %v805, %v848
    %v881 = vmul.f32 %v808, %v849
    %v882 = vmul.f32 %v811, %v850
    %v883 = vmul.f32 %v814, %v851
    %v884 = vmul.f32 %v817, %v852
    %v885 = vmul.f32 %v820, %v853
    %v886 = vmul.f32 %v854, 0.044715
    %v887 = vmul.f32 %v855, 0.044715
    %v888 = vmul.f32 %v856, 0.044715
    %v889 = vmul.f32 %v857, 0.044715
    %v890 = vmul.f32 %v858, 0.044715
    %v891 = vmul.f32 %v859, 0.044715
    %v892 = vmul.f32 %v860, 0.044715
    %v893 = vmul.f32 %v861, 0.044715
    %v894 = vmul.f32 %v862, 0.044715
    %v895 = vmul.f32 %v863, 0.044715
    %v896 = vmul.f32 %v864, 0.044715
    %v897 = vmul.f32 %v865, 0.044715
    %v898 = vmul.f32 %v866, 0.044715
    %v899 = vmul.f32 %v867, 0.044715
    %v900 = vmul.f32 %v868, 0.044715
    %v901 = vmul.f32 %v869, 0.044715
    %v902 = vmul.f32 %v870, 0.044715
    %v903 = vmul.f32 %v871, 0.044715
    %v904 = vmul.f32 %v872, 0.044715
    %v905 = vmul.f32 %v873, 0.044715
    %v906 = vmul.f32 %v874, 0.044715
    %v907 = vmul.f32 %v875, 0.044715
    %v908 = vmul.f32 %v876, 0.044715
    %v909 = vmul.f32 %v877, 0.044715
    %v910 = vmul.f32 %v878, 0.044715
    %v911 = vmul.f32 %v879, 0.044715
    %v912 = vmul.f32 %v880, 0.044715
    %v913 = vmul.f32 %v881, 0.044715
    %v914 = vmul.f32 %v882, 0.044715
    %v915 = vmul.f32 %v883, 0.044715
    %v916 = vmul.f32 %v884, 0.044715
    %v917 = vmul.f32 %v885, 0.044715
    %v918 = vadd.f32 %v727, %v886
    %v919 = vadd.f32 %v730, %v887
    %v920 = vadd.f32 %v733, %v888
    %v921 = vadd.f32 %v736, %v889
    %v922 = vadd.f32 %v739, %v890
    %v923 = vadd.f32 %v742, %v891
    %v924 = vadd.f32 %v745, %v892
    %v925 = vadd.f32 %v748, %v893
    %v926 = vadd.f32 %v751, %v894
    %v927 = vadd.f32 %v754, %v895
    %v928 = vadd.f32 %v757, %v896
    %v929 = vadd.f32 %v760, %v897
    %v930 = vadd.f32 %v763, %v898
    %v931 = vadd.f32 %v766, %v899
    %v932 = vadd.f32 %v769, %v900
    %v933 = vadd.f32 %v772, %v901
    %v934 = vadd.f32 %v775, %v902
    %v935 = vadd.f32 %v778, %v903
    %v936 = vadd.f32 %v781, %v904
    %v937 = vadd.f32 %v784, %v905
    %v938 = vadd.f32 %v787, %v906
    %v939 = vadd.f32 %v790, %v907
    %v940 = vadd.f32 %v793, %v908
    %v941 = vadd.f32 %v796, %v909
    %v942 = vadd.f32 %v799, %v910
    %v943 = vadd.f32 %v802, %v911
    %v944 = vadd.f32 %v805, %v912
    %v945 = vadd.f32 %v808, %v913
    %v946 = vadd.f32 %v811, %v914
    %v947 = vadd.f32 %v814, %v915
    %v948 = vadd.f32 %v817, %v916
    %v949 = vadd.f32 %v820, %v917
    %v950 = vmul.f32 %v918, 0.7978846
    %v951 = vmul.f32 %v919, 0.7978846
    %v952 = vmul.f32 %v920, 0.7978846
    %v953 = vmul.f32 %v921, 0.7978846
    %v954 = vmul.f32 %v922, 0.7978846
    %v955 = vmul.f32 %v923, 0.7978846
    %v956 = vmul.f32 %v924, 0.7978846
    %v957 = vmul.f32 %v925, 0.7978846
    %v958 = vmul.f32 %v926, 0.7978846
    %v959 = vmul.f32 %v927, 0.7978846
    %v960 = vmul.f32 %v928, 0.7978846
    %v961 = vmul.f32 %v929, 0.7978846
    %v962 = vmul.f32 %v930, 0.7978846
    %v963 = vmul.f32 %v931, 0.7978846
    %v964 = vmul.f32 %v932, 0.7978846
    %v965 = vmul.f32 %v933, 0.7978846
    %v966 = vmul.f32 %v934, 0.7978846
    %v967 = vmul.f32 %v935, 0.7978846
    %v968 = vmul.f32 %v936, 0.7978846
    %v969 = vmul.f32 %v937, 0.7978846
    %v970 = vmul.f32 %v938, 0.7978846
    %v971 = vmul.f32 %v939, 0.7978846
    %v972 = vmul.f32 %v940, 0.7978846
    %v973 = vmul.f32 %v941, 0.7978846
    %v974 = vmul.f32 %v942, 0.7978846
    %v975 = vmul.f32 %v943, 0.7978846
    %v976 = vmul.f32 %v944, 0.7978846
    %v977 = vmul.f32 %v945, 0.7978846
    %v978 = vmul.f32 %v946, 0.7978846
    %v979 = vmul.f32 %v947, 0.7978846
    %v980 = vmul.f32 %v948, 0.7978846
    %v981 = vmul.f32 %v949, 0.7978846
    %v982 = vtanh.pop %v950
    %v983 = vtanh.pop %v951
    %v984 = vtanh.pop %v952
    %v985 = vtanh.pop %v953
    %v986 = vtanh.pop %v954
    %v987 = vtanh.pop %v955
    %v988 = vtanh.pop %v956
    %v989 = vtanh.pop %v957
    %v990 = vtanh.pop %v958
    %v991 = vtanh.pop %v959
    %v992 = vtanh.pop %v960
    %v993 = vtanh.pop %v961
    %v994 = vtanh.pop %v962
    %v995 = vtanh.pop %v963
    %v996 = vtanh.pop %v964
    %v997 = vtanh.pop %v965
    %v998 = vtanh.pop %v966
    %v999 = vtanh.pop %v967
    %v1000 = vtanh.pop %v968
    %v1001 = vtanh.pop %v969
    %v1002 = vtanh.pop %v970
    %v1003 = vtanh.pop %v971
    %v1004 = vtanh.pop %v972
    %v1005 = vtanh.pop %v973
    %v1006 = vtanh.pop %v974
    %v1007 = vtanh.pop %v975
    %v1008 = vtanh.pop %v976
    %v1009 = vtanh.pop %v977
    %v1010 = vtanh.pop %v978
    %v1011 = vtanh.pop %v979
    %v1012 = vtanh.pop %v980
    %v1013 = vtanh.pop %v981
    %v1014 = vadd.f32 %v982, 1.0
    %v1015 = vadd.f32 %v983, 1.0
    %v1016 = vadd.f32 %v984, 1.0
    %v1017 = vadd.f32 %v985, 1.0
    %v1018 = vadd.f32 %v986, 1.0
    %v1019 = vadd.f32 %v987, 1.0
    %v1020 = vadd.f32 %v988, 1.0
    %v1021 = vadd.f32 %v989, 1.0
    %v1022 = vadd.f32 %v990, 1.0
    %v1023 = vadd.f32 %v991, 1.0
    %v1024 = vadd.f32 %v992, 1.0
    %v1025 = vadd.f32 %v993, 1.0
    %v1026 = vadd.f32 %v994, 1.0
    %v1027 = vadd.f32 %v995, 1.0
    %v1028 = vadd.f32 %v996, 1.0
    %v1029 = vadd.f32 %v997, 1.0
    %v1030 = vadd.f32 %v998, 1.0
    %v1031 = vadd.f32 %v999, 1.0
    %v1032 = vadd.f32 %v1000, 1.0
    %v1033 = vadd.f32 %v1001, 1.0
    %v1034 = vadd.f32 %v1002, 1.0
    %v1035 = vadd.f32 %v1003, 1.0
    %v1036 = vadd.f32 %v1004, 1.0
    %v1037 = vadd.f32 %v1005, 1.0
    %v1038 = vadd.f32 %v1006, 1.0
    %v1039 = vadd.f32 %v1007, 1.0
    %v1040 = vadd.f32 %v1008, 1.0
    %v1041 = vadd.f32 %v1009, 1.0
    %v1042 = vadd.f32 %v1010, 1.0
    %v1043 = vadd.f32 %v1011, 1.0
    %v1044 = vadd.f32 %v1012, 1.0
    %v1045 = vadd.f32 %v1013, 1.0
    %v1046 = vmul.f32 %v1014, 0.5
    %v1047 = vmul.f32 %v1015, 0.5
    %v1048 = vmul.f32 %v1016, 0.5
    %v1049 = vmul.f32 %v1017, 0.5
    %v1050 = vmul.f32 %v1018, 0.5
    %v1051 = vmul.f32 %v1019, 0.5
    %v1052 = vmul.f32 %v1020, 0.5
    %v1053 = vmul.f32 %v1021, 0.5
    %v1054 = vmul.f32 %v1022, 0.5
    %v1055 = vmul.f32 %v1023, 0.5
    %v1056 = vmul.f32 %v1024, 0.5
    %v1057 = vmul.f32 %v1025, 0.5
    %v1058 = vmul.f32 %v1026, 0.5
    %v1059 = vmul.f32 %v1027, 0.5
    %v1060 = vmul.f32 %v1028, 0.5
    %v1061 = vmul.f32 %v1029, 0.5
    %v1062 = vmul.f32 %v1030, 0.5
    %v1063 = vmul.f32 %v1031, 0.5
    %v1064 = vmul.f32 %v1032, 0.5
    %v1065 = vmul.f32 %v1033, 0.5
    %v1066 = vmul.f32 %v1034, 0.5
    %v1067 = vmul.f32 %v1035, 0.5
    %v1068 = vmul.f32 %v1036, 0.5
    %v1069 = vmul.f32 %v1037, 0.5
    %v1070 = vmul.f32 %v1038, 0.5
    %v1071 = vmul.f32 %v1039, 0.5
    %v1072 = vmul.f32 %v1040, 0.5
    %v1073 = vmul.f32 %v1041, 0.5
    %v1074 = vmul.f32 %v1042, 0.5
    %v1075 = vmul.f32 %v1043, 0.5
    %v1076 = vmul.f32 %v1044, 0.5
    %v1077 = vmul.f32 %v1045, 0.5
    %v1078 = vmul.f32 %v727, %v1046
    %v1079 = vmul.f32 %v730, %v1047
    %v1080 = vmul.f32 %v733, %v1048
    %v1081 = vmul.f32 %v736, %v1049
    %v1082 = vmul.f32 %v739, %v1050
    %v1083 = vmul.f32 %v742, %v1051
    %v1084 = vmul.f32 %v745, %v1052
    %v1085 = vmul.f32 %v748, %v1053
    %v1086 = vmul.f32 %v751, %v1054
    %v1087 = vmul.f32 %v754, %v1055
    %v1088 = vmul.f32 %v757, %v1056
    %v1089 = vmul.f32 %v760, %v1057
    %v1090 = vmul.f32 %v763, %v1058
    %v1091 = vmul.f32 %v766, %v1059
    %v1092 = vmul.f32 %v769, %v1060
    %v1093 = vmul.f32 %v772, %v1061
    %v1094 = vmul.f32 %v775, %v1062
    %v1095 = vmul.f32 %v778, %v1063
    %v1096 = vmul.f32 %v781, %v1064
    %v1097 = vmul.f32 %v784, %v1065
    %v1098 = vmul.f32 %v787, %v1066
    %v1099 = vmul.f32 %v790, %v1067
    %v1100 = vmul.f32 %v793, %v1068
    %v1101 = vmul.f32 %v796, %v1069
    %v1102 = vmul.f32 %v799, %v1070
    %v1103 = vmul.f32 %v802, %v1071
    %v1104 = vmul.f32 %v805, %v1072
    %v1105 = vmul.f32 %v808, %v1073
    %v1106 = vmul.f32 %v811, %v1074
    %v1107 = vmul.f32 %v814, %v1075
    %v1108 = vmul.f32 %v817, %v1076
    %v1109 = vmul.f32 %v820, %v1077
    %v1110 = vpack.c.bf16 %v1079, %v1078
    %v1111 = vpack.c.bf16 %v1081, %v1080
    %v1112 = vpack.c.bf16 %v1083, %v1082
    %v1113 = vpack.c.bf16 %v1085, %v1084
    %v1114 = vpack.c.bf16 %v1087, %v1086
    %v1115 = vpack.c.bf16 %v1089, %v1088
    %v1116 = vpack.c.bf16 %v1091, %v1090
    %v1117 = vpack.c.bf16 %v1093, %v1092
    %v1118 = vpack.c.bf16 %v1095, %v1094
    %v1119 = vpack.c.bf16 %v1097, %v1096
    %v1120 = vpack.c.bf16 %v1099, %v1098
    %v1121 = vpack.c.bf16 %v1101, %v1100
    %v1122 = vpack.c.bf16 %v1103, %v1102
    %v1123 = vpack.c.bf16 %v1105, %v1104
    %v1124 = vpack.c.bf16 %v1107, %v1106
    %v1125 = vpack.c.bf16 %v1109, %v1108
    %v1126 = vld [vmem:[%s10] sm:$0xf]
    %v1127 = vld [vmem:[%s10 + $0x4] sm:$0xf]
    %v1128 = vld [vmem:[%s10 + $0x8] sm:$0xf]
    %v1129 = vld [vmem:[%s10 + $0xc] sm:$0xf]
    %v1130 = vld [vmem:[%s10 + $0x10] sm:$0xf]
    %v1131 = vld [vmem:[%s10 + $0x14] sm:$0xf]
    %v1132 = vld [vmem:[%s10 + $0x18] sm:$0xf]
    %v1133 = vld [vmem:[%s10 + $0x1c] sm:$0xf]
    %v1134 = vld [vmem:[%s10 + $0x20] sm:$0xf]
    %v1135 = vld [vmem:[%s10 + $0x24] sm:$0xf]
    %v1136 = vld [vmem:[%s10 + $0x28] sm:$0xf]
    %v1137 = vld [vmem:[%s10 + $0x2c] sm:$0xf]
    %v1138 = vld [vmem:[%s10 + $0x30] sm:$0xf]
    %v1139 = vld [vmem:[%s10 + $0x34] sm:$0xf]
    %v1140 = vld [vmem:[%s10 + $0x38] sm:$0xf]
    %v1141 = vld [vmem:[%s10 + $0x3c] sm:$0xf]
    %v1158 = vunpack.c.l.b16 %v1126
    %v1159 = vunpack.c.l.b16 %v1127
    %v1160 = vunpack.c.l.b16 %v1128
    %v1161 = vunpack.c.l.b16 %v1129
    %v1162 = vunpack.c.l.b16 %v1130
    %v1163 = vunpack.c.l.b16 %v1131
    %v1164 = vunpack.c.l.b16 %v1132
    %v1165 = vunpack.c.l.b16 %v1133
    %v1166 = vunpack.c.l.b16 %v1134
    %v1167 = vunpack.c.l.b16 %v1135
    %v1168 = vunpack.c.l.b16 %v1136
    %v1169 = vunpack.c.l.b16 %v1137
    %v1170 = vunpack.c.l.b16 %v1138
    %v1171 = vunpack.c.l.b16 %v1139
    %v1172 = vunpack.c.l.b16 %v1140
    %v1173 = vunpack.c.l.b16 %v1141
    %v1174 = vpack.c.b16 %v1159, %v1158
    %v1175 = vpack.c.b16 %v1161, %v1160
    %v1176 = vpack.c.b16 %v1163, %v1162
    %v1177 = vpack.c.b16 %v1165, %v1164
    %v1178 = vpack.c.b16 %v1167, %v1166
    %v1179 = vpack.c.b16 %v1169, %v1168
    %v1180 = vpack.c.b16 %v1171, %v1170
    %v1181 = vpack.c.b16 %v1173, %v1172
    %1190 = vmatpush.bf16.msra.mxu0 %v1181
    %1191 = vmatpush.bf16.msra.mxu0 %v1180
    %1192 = vmatpush.bf16.msra.mxu0 %v1179
    %1193 = vmatpush.bf16.msra.mxu0 %v1178
    %1194 = vmatpush.bf16.msra.mxu0 %v1177
    %1195 = vmatpush.bf16.msra.mxu0 %v1176
    %1196 = vmatpush.bf16.msra.mxu0 %v1175
    %1197 = vmatpush.bf16.msra.mxu0 %v1174
    %1198 = vmatmul.bf16.gmra.mxu0 %v1110
    %v1199 = vpop.f32.mrf.mxu0
    %v1200 = vadd.f32 0.0, %v1199
    %v1201 = vpop.f32.mrf.mxu0
    %v1202 = vadd.f32 0.0, %v1201
    %1203 = vmatmul.bf16.gmra.mxu0 %v1111
    %v1204 = vpop.f32.mrf.mxu0
    %v1205 = vadd.f32 0.0, %v1204
    %v1206 = vpop.f32.mrf.mxu0
    %v1207 = vadd.f32 0.0, %v1206
    %1208 = vmatmul.bf16.gmra.mxu0 %v1112
    %v1209 = vpop.f32.mrf.mxu0
    %v1210 = vadd.f32 0.0, %v1209
    %v1211 = vpop.f32.mrf.mxu0
    %v1212 = vadd.f32 0.0, %v1211
    %1213 = vmatmul.bf16.gmra.mxu0 %v1113
    %v1214 = vpop.f32.mrf.mxu0
    %v1215 = vadd.f32 0.0, %v1214
    %v1216 = vpop.f32.mrf.mxu0
    %v1217 = vadd.f32 0.0, %v1216
    %1218 = vmatmul.bf16.gmra.mxu0 %v1114
    %v1219 = vpop.f32.mrf.mxu0
    %v1220 = vadd.f32 0.0, %v1219
    %v1221 = vpop.f32.mrf.mxu0
    %v1222 = vadd.f32 0.0, %v1221
    %1223 = vmatmul.bf16.gmra.mxu0 %v1115
    %v1224 = vpop.f32.mrf.mxu0
    %v1225 = vadd.f32 0.0, %v1224
    %v1226 = vpop.f32.mrf.mxu0
    %v1227 = vadd.f32 0.0, %v1226
    %1228 = vmatmul.bf16.gmra.mxu0 %v1116
    %v1229 = vpop.f32.mrf.mxu0
    %v1230 = vadd.f32 0.0, %v1229
    %v1231 = vpop.f32.mrf.mxu0
    %v1232 = vadd.f32 0.0, %v1231
    %1233 = vmatmul.bf16.gmra.mxu0 %v1117
    %v1234 = vpop.f32.mrf.mxu0
    %v1235 = vadd.f32 0.0, %v1234
    %v1236 = vpop.f32.mrf.mxu0
    %v1237 = vadd.f32 0.0, %v1236
    %1238 = vmatmul.bf16.gmra.mxu0 %v1118
    %v1239 = vpop.f32.mrf.mxu0
    %v1240 = vadd.f32 0.0, %v1239
    %v1241 = vpop.f32.mrf.mxu0
    %v1242 = vadd.f32 0.0, %v1241
    %1243 = vmatmul.bf16.gmra.mxu0 %v1119
    %v1244 = vpop.f32.mrf.mxu0
    %v1245 = vadd.f32 0.0, %v1244
    %v1246 = vpop.f32.mrf.mxu0
    %v1247 = vadd.f32 0.0, %v1246
    %1248 = vmatmul.bf16.gmra.mxu0 %v1120
    %v1249 = vpop.f32.mrf.mxu0
    %v1250 = vadd.f32 0.0, %v1249
    %v1251 = vpop.f32.mrf.mxu0
    %v1252 = vadd.f32 0.0, %v1251
    %1253 = vmatmul.bf16.gmra.mxu0 %v1121
    %v1254 = vpop.f32.mrf.mxu0
    %v1255 = vadd.f32 0.0, %v1254
    %v1256 = vpop.f32.mrf.mxu0
    %v1257 = vadd.f32 0.0, %v1256
    %1258 = vmatmul.bf16.gmra.mxu0 %v1122
    %v1259 = vpop.f32.mrf.mxu0
    %v1260 = vadd.f32 0.0, %v1259
    %v1261 = vpop.f32.mrf.mxu0
    %v1262 = vadd.f32 0.0, %v1261
    %1263 = vmatmul.bf16.gmra.mxu0 %v1123
    %v1264 = vpop.f32.mrf.mxu0
    %v1265 = vadd.f32 0.0, %v1264
    %v1266 = vpop.f32.mrf.mxu0
    %v1267 = vadd.f32 0.0, %v1266
    %1268 = vmatmul.bf16.gmra.mxu0 %v1124
    %v1269 = vpop.f32.mrf.mxu0
    %v1270 = vadd.f32 0.0, %v1269
    %v1271 = vpop.f32.mrf.mxu0
    %v1272 = vadd.f32 0.0, %v1271
    %1273 = vmatmul.bf16.gmra.mxu0 %v1125
    %v1274 = vpop.f32.mrf.mxu0
    %v1275 = vadd.f32 0.0, %v1274
    %v1276 = vpop.f32.mrf.mxu0
    %v1277 = vadd.f32 0.0, %v1276
    %1278 = vdwg.mxu0
    %v1279 = vadd.f32 %v1200, %v1220
    %v1280 = vadd.f32 %v1279, %v1240
    %v1281 = vadd.f32 %v1280, %v1260
    %v1282 = vadd.f32 %v1202, %v1222
    %v1283 = vadd.f32 %v1282, %v1242
    %v1284 = vadd.f32 %v1283, %v1262
    %v1285 = vadd.f32 %v1205, %v1225
    %v1286 = vadd.f32 %v1285, %v1245
    %v1287 = vadd.f32 %v1286, %v1265
    %v1288 = vadd.f32 %v1207, %v1227
    %v1289 = vadd.f32 %v1288, %v1247
    %v1290 = vadd.f32 %v1289, %v1267
    %v1291 = vadd.f32 %v1210, %v1230
    %v1292 = vadd.f32 %v1291, %v1250
    %v1293 = vadd.f32 %v1292, %v1270
    %v1294 = vadd.f32 %v1212, %v1232
    %v1295 = vadd.f32 %v1294, %v1252
    %v1296 = vadd.f32 %v1295, %v1272
    %v1297 = vadd.f32 %v1215, %v1235
    %v1298 = vadd.f32 %v1297, %v1255
    %v1299 = vadd.f32 %v1298, %v1275
    %v1300 = vadd.f32 %v1217, %v1237
    %v1301 = vadd.f32 %v1300, %v1257
    %v1302 = vadd.f32 %v1301, %v1277
    %v1303 = vmul.f32 %v1281, 0.25
    %v1304 = vmul.f32 %v1284, 0.25
    %v1305 = vmul.f32 %v1287, 0.25
    %v1306 = vmul.f32 %v1290, 0.25
    %v1307 = vmul.f32 %v1293, 0.25
    %v1308 = vmul.f32 %v1296, 0.25
    %v1309 = vmul.f32 %v1299, 0.25
    %v1310 = vmul.f32 %v1302, 0.25
    %1311 = vst [vmem:[#allocation5] sm:$0xff] %v1303
    %1312 = vst [vmem:[#allocation5 + $0x8] sm:$0xff] %v1304
    %1313 = vst [vmem:[#allocation5 + $0x10] sm:$0xff] %v1305
    %1314 = vst [vmem:[#allocation5 + $0x18] sm:$0xff] %v1306
    %1315 = vst [vmem:[#allocation5 + $0x20] sm:$0xff] %v1307
    %1316 = vst [vmem:[#allocation5 + $0x28] sm:$0xff] %v1308
    %1317 = vst [vmem:[#allocation5 + $0x30] sm:$0xff] %v1309
    %1318 = vst [vmem:[#allocation5 + $0x38] sm:$0xff] %v1310
    %v1319 = vld [vmem:[%s11] sm:$0xff]
    %v1320 = vld [vmem:[%s11 + $0x8] sm:$0xff]
    %v1322 = vsel %vm104, %v1319, 0
    %v1325 = vsel %vm104, %v1320, 0
    %1327 = vmatpush.msra.mxu0 0.0
    %1328 = vmatpush.msra.mxu0 0.0
    %1329 = vmatpush.msra.mxu0 0.0
    %1330 = vmatpush.msra.mxu0 0.0
    %1331 = vmatpush.msra.mxu0 0.0
    %1332 = vmatpush.msra.mxu0 0.0
    %1333 = vmatpush.msra.mxu0 0.0
    %1334 = vmatpush.msra.mxu0 0.0
    %1335 = vmatpush.msra.mxu0 %v1310
    %1336 = vmatpush.msra.mxu0 %v1309
    %1337 = vmatpush.msra.mxu0 %v1308
    %1338 = vmatpush.msra.mxu0 %v1307
    %1339 = vmatpush.msra.mxu0 %v1306
    %1340 = vmatpush.msra.mxu0 %v1305
    %1341 = vmatpush.msra.mxu0 %v1304
    %1342 = vmatpush.msra.mxu0 %v1303
    %1343 = vmatmul.f32.gmra.mxu0 %v1322
    %v1344 = vpop.f32.mrf.mxu0
    %v1345 = vadd.f32 0.0, %v1344
    %1346 = vmatmul.f32.gmra.mxu0 %v1325
    %v1347 = vpop.f32.mrf.mxu0
    %v1348 = vadd.f32 0.0, %v1347
    %1349 = vdwg.mxu0
    %1350 = vst [vmem:[#allocation6] sm:$0xff] %v1345
    %1351 = vst [vmem:[#allocation6 + $0x8] sm:$0xff] %v1348
    // Predicated region
    $region54: #{forward.3} parent=1 // pred_check
      _
    $region55: #{forward.3} parent=1 // pred_check_branch
      %1353 = sbr.rel (0) target = $region57
    $region56: #{forward.3} parent=1 // pred_region
      %1355 = vsyncadd [#allocation3], 0
      %s1356 = sshll.u32 [#allocation5], 4
      %s1357 = int_to_ptr.vmem [resolvable:$true] %s1356
      %s1358 = sshll.u32 %s12, 4
      %s1359 = int_to_ptr.hbm [resolvable:$true] %s1358
      %1364 = dma.vmem_to_hbm [thread:$0]  %s1357, 1024, %s1359, [#allocation3], 128, 128, 8
    $region57: #{forward.3} parent=1 // pred_fallthru
      _
    // Predicated region
    $region58: #{forward.3} parent=1 // pred_check
      _
    $region59: #{forward.3} parent=1 // pred_check_branch
      %1366 = sbr.rel (0) target = $region61
    $region60: #{forward.3} parent=1 // pred_region
      %1368 = vsyncadd [#allocation7], 0
      %s1369 = sshll.u32 [#allocation6], 4
      %s1370 = int_to_ptr.vmem [resolvable:$true] %s1369
      %s1371 = sshll.u32 %s13, 4
      %s1372 = int_to_ptr.hbm [resolvable:$true] %s1371
      %1377 = dma.vmem_to_hbm [thread:$0]  %s1370, 256, %s1372, [#allocation7], 128, 128, 8
    $region61: #{forward.3} parent=1 // pred_fallthru
      _
    // Predicated region
    $region62: #{forward.3} parent=1 // pred_check
      _
    $region63: #{forward.3} parent=1 // pred_check_branch
      %1379 = sbr.rel (0) target = $region65
    $region64: #{forward.3} parent=1 // pred_region
      %1381 = dma.done [#allocation3], 1024
    $region65: #{forward.3} parent=1 // pred_fallthru
      _
    // Predicated region
    $region66: #{forward.3} parent=1 // pred_check
      _
    $region67: #{forward.3} parent=1 // pred_check_branch
      %1383 = sbr.rel (0) target = $region69
    $region68: #{forward.3} parent=1 // pred_region
      %1385 = dma.done [#allocation7], 256
    $region69: #{forward.3} parent=1 // pred_fallthru
      _
    %1386 = vsyncpa [#allocation3], 1
    %1387 = vsyncpa [#allocation7], 1
    %1388 = vsyncpa [#allocation4], 1

</llo_original>
